<compile_context>
chip_gen: v7x
topology: tpu7x:2x2x1
jax: 0.10.0
libtpu: 0.0.40
codegen_flags: <defaults>
</compile_context>

<pallas_src>
import jax
import jax.numpy as jnp
from jax.experimental import pallas as pl
from jax.experimental.pallas import tpu as pltpu


_LANE = 128  # output tile_n must stay a multiple of this for unmasked stores


def _round_up(x, m):
    return (x + m - 1) // m * m


def _pick_tile_n(n):
    # Multiple of 128 (lane-dense unmasked output store); capped at 1024
    # (per-step overhead already negligible, x tile stays tiny); and >= 2
    # tiles when possible so the "parallel" grid axis splits across v7x's
    # two TensorCores (irrelevant but harmless on v5e/v6e).
    if n <= _LANE:
        return _LANE
    half = _round_up(pl.cdiv(n, 2), _LANE)
    return min(1024, half)


def _listnet_kernel(x_ref, w1_ref, b1_ref, w2_ref, b2_ref, o_ref):
    # Layer 1 on the MXU: (tile_n, F) bf16 @ (F, H) bf16 with f32 accumulation.
    h = jnp.dot(x_ref[...], w1_ref[...], preferred_element_type=jnp.float32)
    h = jnp.maximum(h + b1_ref[...], 0.0)                 # bias + ReLU (f32, VPU)

    # Layer 2: a 1-column MXU matmul wastes the systolic array; do it as a VPU
    # multiply + lane reduction with w2 passed as an f32 (1, H) row.
    # TODO(synk): if a bundle dump ever shows the XLU (lane-reduce + the
    # sublane->lane relayout below) as the binding slot at large tile_n, move
    # this back onto the idle MXU as h @ w2 padded to (H, 128).
    s = jnp.sum(h * w2_ref[...], axis=-1) + b2_ref[0]      # (tile_n,)

    # Lane-dense store: one unmasked row of tile_n scores (docs on lane axis).
    o_ref[...] = s[None, :].astype(o_ref.dtype)


def listnet_forward(x, w1, b1, w2, b2, *, tile_n=None):
    """ListNet forward:  relu(x @ w1 + b1) @ w2 + b2  ->  (N, 1) logits.

    x:  (N, F) float32
    w1: (F, H)  (transposed vs. torch.nn.Linear, i.e. (in, out))
    b1: (1, H)
    w2: (H, 1)
    b2: (1, 1) or scalar
    """
    n, f = x.shape
    h = w1.shape[1]

    if tile_n is None:
        tile_n = _pick_tile_n(n)
    n_tiles = pl.cdiv(n, tile_n)
    n_pad = n_tiles * tile_n

    # bf16 streaming on the dominant x stream and the resident w1; all other
    # operands and all post-matmul math stay f32 (f32 accumulation in the dot).
    x_c = x.astype(jnp.bfloat16)
    w1_c = w1.astype(jnp.bfloat16)
    b1_c = b1.astype(jnp.float32).reshape(1, h)
    w2_row = w2.astype(jnp.float32).reshape(1, h)   # lane-aligned row vector
    b2_c = b2.astype(jnp.float32).reshape(1,)       # 1-D scalar for SMEM

    # TODO(synk): if F/H ever grow past a few thousand, tile the F (reduction)
    # axis and consider pipeline_mode=pl.Buffered(1) on the constant w1 spec
    # to drop its second buffer (matters on v7x's 64 MiB VMEM).
    out = pl.pallas_call(
        _listnet_kernel,
        out_shape=jax.ShapeDtypeStruct((1, n_pad), jnp.float32),
        grid=(n_tiles,),
        in_specs=[
            # Full-F row tiles of x: contiguous HBM DMA, no lane padding.
            pl.BlockSpec((tile_n, f), lambda i: (i, 0)),
            # Weights/biases: constant index_map -> VMEM resident across grid.
            pl.BlockSpec((f, h), lambda i: (0, 0)),
            pl.BlockSpec((1, h), lambda i: (0, 0)),
            pl.BlockSpec((1, h), lambda i: (0, 0)),
            pl.BlockSpec(memory_space=pltpu.MemorySpace.SMEM),  # b2 (1,)
        ],
        # Lane-dense output slab; each step writes one unmasked (1, tile_n) row.
        out_specs=pl.BlockSpec((1, tile_n), lambda i: (0, i)),
        compiler_params=pltpu.CompilerParams(
            dimension_semantics=("parallel",),   # v7x: 2 TCs split the tiles
            vmem_limit_bytes=32 * 1024 * 1024,   # tiny footprint; safe on v7x's 64 MiB
        ),
    )(x_c, w1_c, b1_c, w2_row, b2_c)

    # Drop the ragged-edge garbage rows and restore the PyTorch (N, 1) shape.
    # (Any listwise softmax/loss must see only these first N rows.)
    return out.reshape(-1)[:n].reshape(n, 1)


def init_listnet_params(key, num_input_features, hidden_dim):
    """Deterministic init mimicking torch.nn.Linear's U(-1/sqrt(fan_in), +)."""
    k1, k2, k3, k4 = jax.random.split(key, 4)
    bound1 = 1.0 / (num_input_features ** 0.5)
    bound2 = 1.0 / (hidden_dim ** 0.5)
    # Stored as (in_features, out_features) so the kernel computes x @ W + b.
    w1 = jax.random.uniform(k1, (num_input_features, hidden_dim),
                            jnp.float32, -bound1, bound1)
    b1 = jax.random.uniform(k2, (1, hidden_dim), jnp.float32, -bound1, bound1)
    w2 = jax.random.uniform(k3, (hidden_dim, 1), jnp.float32, -bound2, bound2)
    b2 = jax.random.uniform(k4, (1, 1), jnp.float32, -bound2, bound2)
    return w1, b1, w2, b2


if __name__ == "__main__":
    num_input_features = 32
    hidden_dim = 32
    n_docs = 300   # non-multiple of the row tile: exercises the ragged edge
                   # tile and the [:n] un-padding path; gives 2 grid tiles
                   # (both v7x TensorCores busy)

    key = jax.random.PRNGKey(0)
    kx, kp = jax.random.split(key)
    x = jax.random.normal(kx, (n_docs, num_input_features), jnp.float32)
    w1, b1, w2, b2 = init_listnet_params(kp, num_input_features, hidden_dim)

    fwd = jax.jit(listnet_forward)
    logits = fwd(x, w1, b1, w2, b2)
    jax.block_until_ready(logits)

    # Pure-JAX f32 reference of the same forward pass. Tolerance loosened
    # because x/w1 are streamed in bf16 (accumulation is still f32).
    ref = jnp.maximum(x @ w1 + b1, 0.0) @ w2 + b2
    assert logits.shape == (n_docs, 1)
    assert jnp.allclose(logits, ref, atol=1e-2, rtol=1e-2), (
        float(jnp.max(jnp.abs(logits - ref))))

    print("KERNEL_OK")
</pallas_src>

<mosaic_0001>
module attributes {stable_mosaic.version = 11 : i64} {
  func.func @_listnet_kernel(%arg0: i32, %arg1: memref<256x32xbf16, #tpu.memory_space<vmem>>, %arg2: memref<32x32xbf16, #tpu.memory_space<vmem>>, %arg3: memref<1x32xf32, #tpu.memory_space<vmem>>, %arg4: memref<1x32xf32, #tpu.memory_space<vmem>>, %arg5: memref<1xf32, #tpu.memory_space<smem>>, %arg6: memref<1x256xf32, #tpu.memory_space<vmem>>) attributes {dimension_semantics = [#tpu.dimension_semantics<parallel>], iteration_bounds = array<i64: 2>, scalar_prefetch = 0 : i64, scratch_operands = 0 : i64, tpu.core_type = #tpu.core_type<tc>, window_params = [{transform_indices = @transform_0, window_bounds = array<i64: 256, 32>}, {pipeline_mode = #tpu.pipeline_mode<synchronous>, transform_indices = @transform_1, window_bounds = array<i64: 32, 32>}, {pipeline_mode = #tpu.pipeline_mode<synchronous>, transform_indices = @transform_2, window_bounds = array<i64: 1, 32>}, {pipeline_mode = #tpu.pipeline_mode<synchronous>, transform_indices = @transform_3, window_bounds = array<i64: 1, 32>}, {transform_indices = @transform_4, window_bounds = array<i64: 1>}, {transform_indices = @transform_5, window_bounds = array<i64: 1, 256>}]} {
    %c0 = arith.constant 0 : index
    %c0_0 = arith.constant 0 : index
    %0 = vector.load %arg1[%c0, %c0_0] : memref<256x32xbf16, #tpu.memory_space<vmem>>, vector<256x32xbf16>
    %c0_1 = arith.constant 0 : index
    %c0_2 = arith.constant 0 : index
    %1 = vector.load %arg2[%c0_1, %c0_2] : memref<32x32xbf16, #tpu.memory_space<vmem>>, vector<32x32xbf16>
    %cst = arith.constant dense<0.000000e+00> : vector<256x32xf32>
    %2 = tpu.matmul %0, %1, %cst {dimension_numbers = #tpu.dot_dimension_numbers<[1], [0], [0], [1], [0, 0, 1, 1], [], []>} : vector<256x32xbf16>, vector<32x32xbf16>, vector<256x32xf32> -> vector<256x32xf32>
    %c0_3 = arith.constant 0 : index
    %c0_4 = arith.constant 0 : index
    %3 = vector.load %arg3[%c0_3, %c0_4] : memref<1x32xf32, #tpu.memory_space<vmem>>, vector<1x32xf32>
    %4 = vector.broadcast %3 : vector<1x32xf32> to vector<256x32xf32>
    %5 = arith.addf %2, %4 : vector<256x32xf32>
    %cst_5 = arith.constant 0.000000e+00 : f32
    %6 = vector.broadcast %cst_5 : f32 to vector<256x32xf32>
    %7 = arith.maximumf %5, %6 : vector<256x32xf32>
    %c0_6 = arith.constant 0 : index
    %c0_7 = arith.constant 0 : index
    %8 = vector.load %arg4[%c0_6, %c0_7] : memref<1x32xf32, #tpu.memory_space<vmem>>, vector<1x32xf32>
    %9 = vector.broadcast %8 : vector<1x32xf32> to vector<256x32xf32>
    %10 = arith.mulf %7, %9 : vector<256x32xf32>
    %cst_8 = arith.constant dense<0.000000e+00> : vector<256xf32>
    %11 = vector.multi_reduction <add>, %10, %cst_8 [1] : vector<256x32xf32> to vector<256xf32>
    %c0_9 = arith.constant 0 : index
    %12 = memref.load %arg5[%c0_9] : memref<1xf32, #tpu.memory_space<smem>>
    %13 = vector.broadcast %12 : f32 to vector<256xf32>
    %14 = arith.addf %11, %13 : vector<256xf32>
    %15 = vector.shape_cast %14 : vector<256xf32> to vector<1x256xf32>
    %c0_10 = arith.constant 0 : index
    %c0_11 = arith.constant 0 : index
    %16 = vector.load %arg6[%c0_10, %c0_11] : memref<1x256xf32, #tpu.memory_space<vmem>>, vector<1x256xf32>
    tpu.vector_store %arg6[%c0_10, %c0_11], %15 {strides = array<i32>} : memref<1x256xf32, #tpu.memory_space<vmem>>, vector<1x256xf32>,
    return
  }
  func.func @transform_0(%arg0: i32) -> (i32, i32) {
    %c0_i32 = arith.constant 0 : i32
    %c0_i32_0 = arith.constant 0 : i32
    return %arg0, %c0_i32 : i32, i32
  }
  func.func @transform_1(%arg0: i32) -> (i32, i32) {
    %c0_i32 = arith.constant 0 : i32
    %c0_i32_0 = arith.constant 0 : i32
    %c0_i32_1 = arith.constant 0 : i32
    return %c0_i32, %c0_i32_0 : i32, i32
  }
  func.func @transform_2(%arg0: i32) -> (i32, i32) {
    %c0_i32 = arith.constant 0 : i32
    %c0_i32_0 = arith.constant 0 : i32
    %c0_i32_1 = arith.constant 0 : i32
    return %c0_i32, %c0_i32_0 : i32, i32
  }
  func.func @transform_3(%arg0: i32) -> (i32, i32) {
    %c0_i32 = arith.constant 0 : i32
    %c0_i32_0 = arith.constant 0 : i32
    %c0_i32_1 = arith.constant 0 : i32
    return %c0_i32, %c0_i32_0 : i32, i32
  }
  func.func @transform_4(%arg0: i32) -> i32 {
    %c0_i32 = arith.constant 0 : i32
    %c0_i32_0 = arith.constant 0 : i32
    return %c0_i32 : i32
  }
  func.func @transform_5(%arg0: i32) -> (i32, i32) {
    %c0_i32 = arith.constant 0 : i32
    %c0_i32_0 = arith.constant 0 : i32
    return %c0_i32, %arg0 : i32, i32
  }
}

</mosaic_0001>

<llo_original>
// kernel: listnet_forward.1
$region0: #{listnet_forward.1}
  #allocation0 [shape = 'u32[]', space=smem, size = 0x4, offset = 0x4, fixed_abs, tag = 'smem constant byte address 0x4 - core index']
  #allocation1 [shape = 'u32[144,128]{1,0:T(1,128)}', space=vmem, size = 0x12000, scoped, tag = 'internal scratch']
  #allocation2 [shape = 'f32[1]{0:T(128)S(6)}', space=smem, size = 0x200, scoped, tag = 'scoped memory for listnet_forward.1']
  %s0 = inlined_call_operand.vmem [shape: bf16[300,32], index: 0, kind: input, shape index: {}]
  %s1 = inlined_call_operand.vmem [shape: bf16[32,32], index: 1, kind: input, shape index: {}]
  %s2 = inlined_call_operand.vmem [shape: f32[1,32], index: 2, kind: input, shape index: {}]
  %s3 = inlined_call_operand.vmem [shape: f32[1,32], index: 3, kind: input, shape index: {}]
  %s4 = inlined_call_operand.<no memory space> [shape: f32[1], index: 4, kind: input, shape index: {}]
  %s5 = inlined_call_operand.vmem [shape: f32[1,512], index: 5, kind: output, shape index: {}]
  %s6 = sld [smem:[#allocation0]]
  $region53: #{listnet_forward.1} parent=0
    _
  %s8 = ssub.s32 1, %s6
  %s9 = scalar_select 0, %s8, %s6
  %10 = sst [smem:[#allocation2]] %s4
  loop: start=0, step=1, limit=4
  $region2: #{listnet_forward.1} parent=0 // loop_pre_header
    _
  $region3: #{listnet_forward.1} parent=0 // loop_header
    %s12 = sphi 0, %s16
    %p13 = scmp.ge.s32.totalorder %s12, 4
    %s22 = sphi 0, %s24
    %s25 = sphi 0, %s22
    %s26 = sphi 0, %s25
    %s42 = sphi 0, %s26
    %s46 = sphi 0, %s46
    %s48 = sphi 0, %s46
    %s49 = sphi 0, %s48
    %s63 = sphi 0, %s49
    %s67 = sphi 0, %s67
    %s69 = sphi 0, %s67
    %s70 = sphi 0, %s69
    %s84 = sphi 0, %s70
    %s88 = sphi 0, %s88
    %s90 = sphi 0, %s88
    %s91 = sphi 0, %s90
    %s105 = sphi 0, %s91
    %s109 = sphi 0, %s109
    %s111 = sphi 0, %s109
    %s112 = sphi 0, %s111
    %s126 = sphi 0, %s112
    %s132 = sphi 0, %s134
    %s135 = sphi 0, %s132
    %s136 = sphi 0, %s135
    %s152 = sphi 0, %s136
  $region4: #{listnet_forward.1} parent=0 // loop_header_branch
    %15 = sbr.rel (%p13) target = $region8
  $region5: #{listnet_forward.1} parent=0 // loop_body
    %s17 = ssub.s32 %s12, 1
    %s18 = ssub.s32 %s12, 2
    %s19 = sadd.s32 %s12, 1
    %s20 = ssub.s32 %s12, %s19
    %p21 = scmp.eq.s32.totalorder %s20, 0
    %s23 = sadd.s32 %s22, 1
    %s24 = scalar_select %p21, %s22, %s23
    %p27 = pneg %p21
    %p28 = scmp.eq.s32.totalorder %s12, 1
    %p29 = por %p27, %p28
    %p30 = scmp.ne.s32.totalorder %s22, %s25
    %p31 = scmp.eq.s32.totalorder %s12, 0
    %p32 = por %p30, %p31
    %p33 = scmp.ne.s32.totalorder %s22, %s25
    %p34 = scmp.eq.s32.totalorder %s17, 1
    %p35 = por %p33, %p34
    %p36 = scmp.ne.s32.totalorder %s25, %s26
    %p37 = scmp.eq.s32.totalorder %s17, 0
    %p38 = por %p36, %p37
    %p39 = scmp.ne.s32.totalorder %s25, %s26
    %p40 = scmp.eq.s32.totalorder %s18, 1
    %p41 = por %p39, %p40
    %p43 = scmp.ne.s32.totalorder %s26, %s42
    %p44 = scmp.eq.s32.totalorder %s18, 0
    %p45 = por %p43, %p44
    %s47 = sadd.s32 %s46, 1
    %p50 = scmp.eq.s32.totalorder %s12, 1
    %p51 = scmp.ne.s32.totalorder %s46, %s48
    %p52 = scmp.eq.s32.totalorder %s12, 0
    %p53 = por %p51, %p52
    %p54 = scmp.ne.s32.totalorder %s46, %s48
    %p55 = scmp.eq.s32.totalorder %s17, 1
    %p56 = por %p54, %p55
    %p57 = scmp.ne.s32.totalorder %s48, %s49
    %p58 = scmp.eq.s32.totalorder %s17, 0
    %p59 = por %p57, %p58
    %p60 = scmp.ne.s32.totalorder %s48, %s49
    %p61 = scmp.eq.s32.totalorder %s18, 1
    %p62 = por %p60, %p61
    %p64 = scmp.ne.s32.totalorder %s49, %s63
    %p65 = scmp.eq.s32.totalorder %s18, 0
    %p66 = por %p64, %p65
    %s68 = sadd.s32 %s67, 1
    %p71 = scmp.eq.s32.totalorder %s12, 1
    %p72 = scmp.ne.s32.totalorder %s67, %s69
    %p73 = scmp.eq.s32.totalorder %s12, 0
    %p74 = por %p72, %p73
    %p75 = scmp.ne.s32.totalorder %s67, %s69
    %p76 = scmp.eq.s32.totalorder %s17, 1
    %p77 = por %p75, %p76
    %p78 = scmp.ne.s32.totalorder %s69, %s70
    %p79 = scmp.eq.s32.totalorder %s17, 0
    %p80 = por %p78, %p79
    %p81 = scmp.ne.s32.totalorder %s69, %s70
    %p82 = scmp.eq.s32.totalorder %s18, 1
    %p83 = por %p81, %p82
    %p85 = scmp.ne.s32.totalorder %s70, %s84
    %p86 = scmp.eq.s32.totalorder %s18, 0
    %p87 = por %p85, %p86
    %s89 = sadd.s32 %s88, 1
    %p92 = scmp.eq.s32.totalorder %s12, 1
    %p93 = scmp.ne.s32.totalorder %s88, %s90
    %p94 = scmp.eq.s32.totalorder %s12, 0
    %p95 = por %p93, %p94
    %p96 = scmp.ne.s32.totalorder %s88, %s90
    %p97 = scmp.eq.s32.totalorder %s17, 1
    %p98 = por %p96, %p97
    %p99 = scmp.ne.s32.totalorder %s90, %s91
    %p100 = scmp.eq.s32.totalorder %s17, 0
    %p101 = por %p99, %p100
    %p102 = scmp.ne.s32.totalorder %s90, %s91
    %p103 = scmp.eq.s32.totalorder %s18, 1
    %p104 = por %p102, %p103
    %p106 = scmp.ne.s32.totalorder %s91, %s105
    %p107 = scmp.eq.s32.totalorder %s18, 0
    %p108 = por %p106, %p107
    %s110 = sadd.s32 %s109, 1
    %p113 = scmp.eq.s32.totalorder %s12, 1
    %p114 = scmp.ne.s32.totalorder %s109, %s111
    %p115 = scmp.eq.s32.totalorder %s12, 0
    %p116 = por %p114, %p115
    %p117 = scmp.ne.s32.totalorder %s109, %s111
    %p118 = scmp.eq.s32.totalorder %s17, 1
    %p119 = por %p117, %p118
    %p120 = scmp.ne.s32.totalorder %s111, %s112
    %p121 = scmp.eq.s32.totalorder %s17, 0
    %p122 = por %p120, %p121
    %p123 = scmp.ne.s32.totalorder %s111, %s112
    %p124 = scmp.eq.s32.totalorder %s18, 1
    %p125 = por %p123, %p124
    %p127 = scmp.ne.s32.totalorder %s112, %s126
    %p128 = scmp.eq.s32.totalorder %s18, 0
    %p129 = por %p127, %p128
    %s130 = ssub.s32 %s12, %s19
    %p131 = scmp.eq.s32.totalorder %s130, 0
    %s133 = sadd.s32 %s132, 1
    %s134 = scalar_select %p131, %s132, %s133
    %p137 = pneg %p131
    %p138 = scmp.eq.s32.totalorder %s12, 1
    %p139 = por %p137, %p138
    %p140 = scmp.ne.s32.totalorder %s132, %s135
    %p141 = scmp.eq.s32.totalorder %s12, 0
    %p142 = por %p140, %p141
    %p143 = scmp.ne.s32.totalorder %s132, %s135
    %p144 = scmp.eq.s32.totalorder %s17, 1
    %p145 = por %p143, %p144
    %p146 = scmp.ne.s32.totalorder %s135, %s136
    %p147 = scmp.eq.s32.totalorder %s17, 0
    %p148 = por %p146, %p147
    %p149 = scmp.ne.s32.totalorder %s135, %s136
    %p150 = scmp.eq.s32.totalorder %s18, 1
    %p151 = por %p149, %p150
    %p153 = scmp.ne.s32.totalorder %s136, %s152
    %p154 = scmp.eq.s32.totalorder %s18, 0
    %p155 = por %p153, %p154
    %p156 = scmp.le.s32.totalorder 1, %s12
    %p157 = scmp.lt.s32.totalorder %s12, 3
    %p158 = pnand %p156, %p157
    %p159 = pneg %p158
    // Predicated region
    $region9: #{listnet_forward.1} parent=5 // pred_check
      _
    $region10: #{listnet_forward.1} parent=5 // pred_check_branch
      %161 = sbr.rel (%p158) target = $region12
    $region11: #{listnet_forward.1} parent=5 // pred_region
      %s162 = ssub.s32 %s12, 1
      // Predicated region
      $region13: #{listnet_forward.1} parent=11 // pred_check
        %p163 = pneg %p59
      $region14: #{listnet_forward.1} parent=11 // pred_check_branch
        %165 = sbr.rel (%p163) target = $region16
      $region15: #{listnet_forward.1} parent=11 // pred_region
        _
      $region16: #{listnet_forward.1} parent=11 // pred_fallthru
        _
      // Predicated region
      $region17: #{listnet_forward.1} parent=11 // pred_check
        %p166 = pneg %p80
      $region18: #{listnet_forward.1} parent=11 // pred_check_branch
        %168 = sbr.rel (%p166) target = $region20
      $region19: #{listnet_forward.1} parent=11 // pred_region
        _
      $region20: #{listnet_forward.1} parent=11 // pred_fallthru
        _
      // Predicated region
      $region21: #{listnet_forward.1} parent=11 // pred_check
        %p169 = pneg %p101
      $region22: #{listnet_forward.1} parent=11 // pred_check_branch
        %171 = sbr.rel (%p169) target = $region24
      $region23: #{listnet_forward.1} parent=11 // pred_region
        _
      $region24: #{listnet_forward.1} parent=11 // pred_fallthru
        _
      // Predicated region
      $region25: #{listnet_forward.1} parent=11 // pred_check
        %p172 = pneg %p122
      $region26: #{listnet_forward.1} parent=11 // pred_check_branch
        %174 = sbr.rel (%p172) target = $region28
      $region27: #{listnet_forward.1} parent=11 // pred_region
        _
      $region28: #{listnet_forward.1} parent=11 // pred_fallthru
        _
    $region12: #{listnet_forward.1} parent=5 // pred_fallthru
      _
    %p175 = scmp.lt.s32.totalorder %s12, 2
    // Predicated region
    $region29: #{listnet_forward.1} parent=5 // pred_check
      %p176 = pneg %p175
    $region30: #{listnet_forward.1} parent=5 // pred_check_branch
      %178 = sbr.rel (%p176) target = $region32
    $region31: #{listnet_forward.1} parent=5 // pred_region
      // Predicated region
      $region33: #{listnet_forward.1} parent=31 // pred_check
        %p179 = pneg %p32
      $region34: #{listnet_forward.1} parent=31 // pred_check_branch
        %181 = sbr.rel (%p179) target = $region36
      $region35: #{listnet_forward.1} parent=31 // pred_region
        %s182 = smul.u32 32, %s12
        %s183 = ssub.s32 38, %s182
        %p184 = scmp.lt.s32.totalorder %s183, 32
        %s185 = scalar_select %p184, %s183, 32
        %s186 = smul.u32 64, %s185
        %p187 = scmp.lt.s32.totalorder %s182, 37
        %s188 = scalar_select %p187, %s182, 37
        %s189 = smul.addr %s188, 4
        %s190 = scalar_lea.vmem %s0, %s189
        %s191 = smul.u32 32, %s12
        %s192 = ssub.s32 38, %s191
        %p193 = scmp.lt.s32.totalorder %s192, 32
        %s194 = scalar_select %p193, %s192, 32
        %s195 = smul.u32 64, %s194
      $region36: #{listnet_forward.1} parent=31 // pred_fallthru
        _
    $region32: #{listnet_forward.1} parent=5 // pred_fallthru
      _
    %p196 = scmp.le.s32.totalorder 1, %s12
    %p197 = scmp.lt.s32.totalorder %s12, 3
    %p198 = pnand %p196, %p197
    %p199 = pneg %p198
    // Predicated region
    $region37: #{listnet_forward.1} parent=5 // pred_check
      _
    $region38: #{listnet_forward.1} parent=5 // pred_check_branch
      %201 = sbr.rel (%p198) target = $region40
    $region39: #{listnet_forward.1} parent=5 // pred_region
      %s202 = ssub.s32 %s12, 1
      %s203 = smul.u32 32, %s17
      %s204 = ssub.s32 38, %s203
      %p205 = scmp.lt.s32.totalorder %s204, 32
      %s206 = scalar_select %p205, %s204, 32
      %s207 = smul.u32 64, %s206
      %p208 = scmp.lt.s32.totalorder %s203, 37
      %s209 = scalar_select %p208, %s203, 37
      %s210 = smul.addr %s209, 4
      %s211 = scalar_lea.vmem %s0, %s210
      %p212 = pneg %p38
      %p213 = pneg %p35
      %p214 = pneg %p59
      %p215 = pneg %p56
      %p216 = pneg %p80
      %p217 = pneg %p77
      %p218 = pneg %p101
      %p219 = pneg %p98
      %p220 = pneg %p122
      %p221 = pneg %p119
      %p222 = pneg %p148
      %p223 = pneg %p145
      %s224 = smul.u32 2, %s17
      %p225 = scmp.lt.s32.totalorder %s224, 3
      %s226 = scalar_select %p225, %s224, 3
      %s227 = scalar_lea.vmem %s5, %s226
      %s228 = smul.u32 32, %s17
      %s229 = ssub.s32 38, %s228
      %p230 = scmp.lt.s32.totalorder %s229, 32
      %s231 = scalar_select %p230, %s229, 32
      %s232 = smul.u32 64, %s231
      %p233 = scmp.lt.s32.totalorder %s228, 37
      %s234 = scalar_select %p233, %s228, 37
      %s235 = smul.addr %s234, 4
      %s236 = scalar_lea.vmem %s0, %s235
      %s237 = smul.u32 32, %s17
      %s238 = ssub.s32 38, %s237
      %p239 = scmp.lt.s32.totalorder %s238, 32
      %s240 = scalar_select %p239, %s238, 32
      %s241 = smul.u32 64, %s240
      %s242 = smul.u32 2, %s17
      %p243 = scmp.lt.s32.totalorder %s242, 3
      %s244 = scalar_select %p243, %s242, 3
      %s245 = scalar_lea.vmem %s5, %s244
      %s246 = smul.u32 2, %s17
      %v248 = vld [vmem:[%s236] sm:$0xf]
      %v249 = vld [vmem:[%s236 + $0x4] sm:$0xf]
      %v250 = vld [vmem:[%s236 + $0x8] sm:$0xf]
      %v251 = vld [vmem:[%s236 + $0xc] sm:$0xf]
      %v252 = vld [vmem:[%s236 + $0x10] sm:$0xf]
      %v253 = vld [vmem:[%s236 + $0x14] sm:$0xf]
      %v254 = vld [vmem:[%s236 + $0x18] sm:$0xf]
      %v255 = vld [vmem:[%s236 + $0x1c] sm:$0xf]
      %v256 = vld [vmem:[%s236 + $0x20] sm:$0xf]
      %v257 = vld [vmem:[%s236 + $0x24] sm:$0xf]
      %v258 = vld [vmem:[%s236 + $0x28] sm:$0xf]
      %v259 = vld [vmem:[%s236 + $0x2c] sm:$0xf]
      %v260 = vld [vmem:[%s236 + $0x30] sm:$0xf]
      %v261 = vld [vmem:[%s236 + $0x34] sm:$0xf]
      %v262 = vld [vmem:[%s236 + $0x38] sm:$0xf]
      %v263 = vld [vmem:[%s236 + $0x3c] sm:$0xf]
      %v264 = vld [vmem:[%s236 + $0x40] sm:$0xf]
      %v265 = vld [vmem:[%s236 + $0x44] sm:$0xf]
      %v266 = vld [vmem:[%s236 + $0x48] sm:$0xf]
      %v267 = vld [vmem:[%s236 + $0x4c] sm:$0xf]
      %v268 = vld [vmem:[%s236 + $0x50] sm:$0xf]
      %v269 = vld [vmem:[%s236 + $0x54] sm:$0xf]
      %v270 = vld [vmem:[%s236 + $0x58] sm:$0xf]
      %v271 = vld [vmem:[%s236 + $0x5c] sm:$0xf]
      %v272 = vld [vmem:[%s236 + $0x60] sm:$0xf]
      %v273 = vld [vmem:[%s236 + $0x64] sm:$0xf]
      %v274 = vld [vmem:[%s236 + $0x68] sm:$0xf]
      %v275 = vld [vmem:[%s236 + $0x6c] sm:$0xf]
      %v276 = vld [vmem:[%s236 + $0x70] sm:$0xf]
      %v277 = vld [vmem:[%s236 + $0x74] sm:$0xf]
      %v278 = vld [vmem:[%s236 + $0x78] sm:$0xf]
      %v279 = vld [vmem:[%s236 + $0x7c] sm:$0xf]
      %v280 = vld [vmem:[%s1] sm:$0xf]
      %v281 = vld [vmem:[%s1 + $0x4] sm:$0xf]
      %v282 = vld [vmem:[%s1 + $0x8] sm:$0xf]
      %v283 = vld [vmem:[%s1 + $0xc] sm:$0xf]
      %v284 = vld [vmem:[%s2] sm:$0x1]
      %v286 = vlaneseq
      %v287 = vshrl.u32 %v286, 7
      %v288 = vsub.s32 0, %v287
      %v289 = vrot.slane %v284, %v288
      %v323 = vunpack.c.l.b16 %v248
      %v324 = vunpack.c.l.b16 %v249
      %v325 = vunpack.c.l.b16 %v250
      %v326 = vunpack.c.l.b16 %v251
      %v327 = vunpack.c.l.b16 %v252
      %v328 = vunpack.c.l.b16 %v253
      %v329 = vunpack.c.l.b16 %v254
      %v330 = vunpack.c.l.b16 %v255
      %v331 = vunpack.c.l.b16 %v256
      %v332 = vunpack.c.l.b16 %v257
      %v333 = vunpack.c.l.b16 %v258
      %v334 = vunpack.c.l.b16 %v259
      %v335 = vunpack.c.l.b16 %v260
      %v336 = vunpack.c.l.b16 %v261
      %v337 = vunpack.c.l.b16 %v262
      %v338 = vunpack.c.l.b16 %v263
      %v339 = vunpack.c.l.b16 %v264
      %v340 = vunpack.c.l.b16 %v265
      %v341 = vunpack.c.l.b16 %v266
      %v342 = vunpack.c.l.b16 %v267
      %v343 = vunpack.c.l.b16 %v268
      %v344 = vunpack.c.l.b16 %v269
      %v345 = vunpack.c.l.b16 %v270
      %v346 = vunpack.c.l.b16 %v271
      %v347 = vunpack.c.l.b16 %v272
      %v348 = vunpack.c.l.b16 %v273
      %v349 = vunpack.c.l.b16 %v274
      %v350 = vunpack.c.l.b16 %v275
      %v351 = vunpack.c.l.b16 %v276
      %v352 = vunpack.c.l.b16 %v277
      %v353 = vunpack.c.l.b16 %v278
      %v354 = vunpack.c.l.b16 %v279
      %v355 = vpack.c.b16 %v324, %v323
      %v356 = vpack.c.b16 %v326, %v325
      %v357 = vpack.c.b16 %v328, %v327
      %v358 = vpack.c.b16 %v330, %v329
      %v359 = vpack.c.b16 %v332, %v331
      %v360 = vpack.c.b16 %v334, %v333
      %v361 = vpack.c.b16 %v336, %v335
      %v362 = vpack.c.b16 %v338, %v337
      %v363 = vpack.c.b16 %v340, %v339
      %v364 = vpack.c.b16 %v342, %v341
      %v365 = vpack.c.b16 %v344, %v343
      %v366 = vpack.c.b16 %v346, %v345
      %v367 = vpack.c.b16 %v348, %v347
      %v368 = vpack.c.b16 %v350, %v349
      %v369 = vpack.c.b16 %v352, %v351
      %v370 = vpack.c.b16 %v354, %v353
      %v375 = vunpack.c.l.b16 %v280
      %v376 = vunpack.c.l.b16 %v281
      %v377 = vunpack.c.l.b16 %v282
      %v378 = vunpack.c.l.b16 %v283
      %v379 = vpack.c.b16 %v376, %v375
      %v380 = vpack.c.b16 %v378, %v377
      %vm383 = vcmask 261120
      %v385 = vsel %vm383, %v355, 0
      %v388 = vsel %vm383, %v356, 0
      %v391 = vsel %vm383, %v357, 0
      %v394 = vsel %vm383, %v358, 0
      %v397 = vsel %vm383, %v359, 0
      %v400 = vsel %vm383, %v360, 0
      %v403 = vsel %vm383, %v361, 0
      %v406 = vsel %vm383, %v362, 0
      %v409 = vsel %vm383, %v363, 0
      %v412 = vsel %vm383, %v364, 0
      %v415 = vsel %vm383, %v365, 0
      %v418 = vsel %vm383, %v366, 0
      %v421 = vsel %vm383, %v367, 0
      %v424 = vsel %vm383, %v368, 0
      %v427 = vsel %vm383, %v369, 0
      %v430 = vsel %vm383, %v370, 0
      %432 = vmatprep.subr.bf16.mxu0 0
      %433 = vmatpush1.bf16.msra.mxu0 %v379
      %434 = vmatprep.subr.bf16.mxu0 0
      %435 = vmatpush1.bf16.msra.mxu0 %v380
      %436 = vmatprep.subr.bf16.mxu0 0
      %437 = vmatpush1.bf16.msra.mxu0 0
      %438 = vmatprep.subr.bf16.mxu0 0
      %439 = vmatpush1.bf16.msra.mxu0 0
      %440 = vmatprep.subr.bf16.mxu0 0
      %441 = vmatpush1.bf16.msra.mxu0 0
      %442 = vmatprep.subr.bf16.mxu0 0
      %443 = vmatpush1.bf16.msra.mxu0 0
      %444 = vmatprep.subr.bf16.mxu0 0
      %445 = vmatpush1.bf16.msra.mxu0 0
      %446 = vmatprep.subr.bf16.mxu0 0
      %447 = vmatpush1.bf16.msra.mxu0 0
      %448 = vmatprep.subr.bf16.mxu0 0
      %449 = vmatpush1.bf16.msra.mxu0 0
      %450 = vmatprep.subr.bf16.mxu0 0
      %451 = vmatpush1.bf16.msra.mxu0 0
      %452 = vmatprep.subr.bf16.mxu0 0
      %453 = vmatpush1.bf16.msra.mxu0 0
      %454 = vmatprep.subr.bf16.mxu0 0
      %455 = vmatpush1.bf16.msra.mxu0 0
      %456 = vmatprep.subr.bf16.mxu0 0
      %457 = vmatpush1.bf16.msra.mxu0 0
      %458 = vmatprep.subr.bf16.mxu0 0
      %459 = vmatpush1.bf16.msra.mxu0 0
      %460 = vmatprep.subr.bf16.mxu0 0
      %461 = vmatpush1.bf16.msra.mxu0 0
      %462 = vmatprep.subr.bf16.mxu0 0
      %463 = vmatpush1.bf16.msra.mxu0 0
      %464 = vmatprep.mubr.bf16.mxu0 0
      %465 = vmatmul.mubr.bf16.gmra.mrb[0].mxu0 %v385
      %v466 = vpop.f32.mrb[0].mxu0
      %v467 = vadd.f32 %v289, %v466
      %v468 = vpop.f32.mrb[0].mxu0
      %v469 = vpop.f32.mrb[0].mxu0
      %v470 = vadd.f32 %v289, %v469
      %v471 = vpop.f32.mrb[0].mxu0
      %472 = vmatprep.mubr.bf16.mxu0 0
      %473 = vmatmul.mubr.bf16.gmra.mrb[0].mxu0 %v388
      %v474 = vpop.f32.mrb[0].mxu0
      %v475 = vadd.f32 %v289, %v474
      %v476 = vpop.f32.mrb[0].mxu0
      %v477 = vpop.f32.mrb[0].mxu0
      %v478 = vadd.f32 %v289, %v477
      %v479 = vpop.f32.mrb[0].mxu0
      %480 = vmatprep.mubr.bf16.mxu0 0
      %481 = vmatmul.mubr.bf16.gmra.mrb[0].mxu0 %v391
      %v482 = vpop.f32.mrb[0].mxu0
      %v483 = vadd.f32 %v289, %v482
      %v484 = vpop.f32.mrb[0].mxu0
      %v485 = vpop.f32.mrb[0].mxu0
      %v486 = vadd.f32 %v289, %v485
      %v487 = vpop.f32.mrb[0].mxu0
      %488 = vmatprep.mubr.bf16.mxu0 0
      %489 = vmatmul.mubr.bf16.gmra.mrb[0].mxu0 %v394
      %v490 = vpop.f32.mrb[0].mxu0
      %v491 = vadd.f32 %v289, %v490
      %v492 = vpop.f32.mrb[0].mxu0
      %v493 = vpop.f32.mrb[0].mxu0
      %v494 = vadd.f32 %v289, %v493
      %v495 = vpop.f32.mrb[0].mxu0
      %496 = vmatprep.mubr.bf16.mxu0 0
      %497 = vmatmul.mubr.bf16.gmra.mrb[0].mxu0 %v397
      %v498 = vpop.f32.mrb[0].mxu0
      %v499 = vadd.f32 %v289, %v498
      %v500 = vpop.f32.mrb[0].mxu0
      %v501 = vpop.f32.mrb[0].mxu0
      %v502 = vadd.f32 %v289, %v501
      %v503 = vpop.f32.mrb[0].mxu0
      %504 = vmatprep.mubr.bf16.mxu0 0
      %505 = vmatmul.mubr.bf16.gmra.mrb[0].mxu0 %v400
      %v506 = vpop.f32.mrb[0].mxu0
      %v507 = vadd.f32 %v289, %v506
      %v508 = vpop.f32.mrb[0].mxu0
      %v509 = vpop.f32.mrb[0].mxu0
      %v510 = vadd.f32 %v289, %v509
      %v511 = vpop.f32.mrb[0].mxu0
      %512 = vmatprep.mubr.bf16.mxu0 0
      %513 = vmatmul.mubr.bf16.gmra.mrb[0].mxu0 %v403
      %v514 = vpop.f32.mrb[0].mxu0
      %v515 = vadd.f32 %v289, %v514
      %v516 = vpop.f32.mrb[0].mxu0
      %v517 = vpop.f32.mrb[0].mxu0
      %v518 = vadd.f32 %v289, %v517
      %v519 = vpop.f32.mrb[0].mxu0
      %520 = vmatprep.mubr.bf16.mxu0 0
      %521 = vmatmul.mubr.bf16.gmra.mrb[0].mxu0 %v406
      %v522 = vpop.f32.mrb[0].mxu0
      %v523 = vadd.f32 %v289, %v522
      %v524 = vpop.f32.mrb[0].mxu0
      %v525 = vpop.f32.mrb[0].mxu0
      %v526 = vadd.f32 %v289, %v525
      %v527 = vpop.f32.mrb[0].mxu0
      %528 = vmatprep.mubr.bf16.mxu0 0
      %529 = vmatmul.mubr.bf16.gmra.mrb[0].mxu0 %v409
      %v530 = vpop.f32.mrb[0].mxu0
      %v531 = vadd.f32 %v289, %v530
      %v532 = vpop.f32.mrb[0].mxu0
      %v533 = vpop.f32.mrb[0].mxu0
      %v534 = vadd.f32 %v289, %v533
      %v535 = vpop.f32.mrb[0].mxu0
      %536 = vmatprep.mubr.bf16.mxu0 0
      %537 = vmatmul.mubr.bf16.gmra.mrb[0].mxu0 %v412
      %v538 = vpop.f32.mrb[0].mxu0
      %v539 = vadd.f32 %v289, %v538
      %v540 = vpop.f32.mrb[0].mxu0
      %v541 = vpop.f32.mrb[0].mxu0
      %v542 = vadd.f32 %v289, %v541
      %v543 = vpop.f32.mrb[0].mxu0
      %544 = vmatprep.mubr.bf16.mxu0 0
      %545 = vmatmul.mubr.bf16.gmra.mrb[0].mxu0 %v415
      %v546 = vpop.f32.mrb[0].mxu0
      %v547 = vadd.f32 %v289, %v546
      %v548 = vpop.f32.mrb[0].mxu0
      %v549 = vpop.f32.mrb[0].mxu0
      %v550 = vadd.f32 %v289, %v549
      %v551 = vpop.f32.mrb[0].mxu0
      %552 = vmatprep.mubr.bf16.mxu0 0
      %553 = vmatmul.mubr.bf16.gmra.mrb[0].mxu0 %v418
      %v554 = vpop.f32.mrb[0].mxu0
      %v555 = vadd.f32 %v289, %v554
      %v556 = vpop.f32.mrb[0].mxu0
      %v557 = vpop.f32.mrb[0].mxu0
      %v558 = vadd.f32 %v289, %v557
      %v559 = vpop.f32.mrb[0].mxu0
      %560 = vmatprep.mubr.bf16.mxu0 0
      %561 = vmatmul.mubr.bf16.gmra.mrb[0].mxu0 %v421
      %v562 = vpop.f32.mrb[0].mxu0
      %v563 = vadd.f32 %v289, %v562
      %v564 = vpop.f32.mrb[0].mxu0
      %v565 = vpop.f32.mrb[0].mxu0
      %v566 = vadd.f32 %v289, %v565
      %v567 = vpop.f32.mrb[0].mxu0
      %568 = vmatprep.mubr.bf16.mxu0 0
      %569 = vmatmul.mubr.bf16.gmra.mrb[0].mxu0 %v424
      %v570 = vpop.f32.mrb[0].mxu0
      %v571 = vadd.f32 %v289, %v570
      %v572 = vpop.f32.mrb[0].mxu0
      %v573 = vpop.f32.mrb[0].mxu0
      %v574 = vadd.f32 %v289, %v573
      %v575 = vpop.f32.mrb[0].mxu0
      %576 = vmatprep.mubr.bf16.mxu0 0
      %577 = vmatmul.mubr.bf16.gmra.mrb[0].mxu0 %v427
      %v578 = vpop.f32.mrb[0].mxu0
      %v579 = vadd.f32 %v289, %v578
      %v580 = vpop.f32.mrb[0].mxu0
      %v581 = vpop.f32.mrb[0].mxu0
      %v582 = vadd.f32 %v289, %v581
      %v583 = vpop.f32.mrb[0].mxu0
      %584 = vmatprep.mubr.bf16.mxu0 0
      %585 = vmatmul.mubr.bf16.gmra.mrb[0].mxu0 %v430
      %v586 = vpop.f32.mrb[0].mxu0
      %v587 = vadd.f32 %v289, %v586
      %v588 = vpop.f32.mrb[0].mxu0
      %v589 = vpop.f32.mrb[0].mxu0
      %v590 = vadd.f32 %v289, %v589
      %v591 = vpop.f32.mrb[0].mxu0
      %592 = vdwg.mxu0
      %v593 = vmax.f32 %v467, 0.0
      %v594 = vmax.f32 %v470, 0.0
      %v595 = vmax.f32 %v475, 0.0
      %v596 = vmax.f32 %v478, 0.0
      %v597 = vmax.f32 %v483, 0.0
      %v598 = vmax.f32 %v486, 0.0
      %v599 = vmax.f32 %v491, 0.0
      %v600 = vmax.f32 %v494, 0.0
      %v601 = vmax.f32 %v499, 0.0
      %v602 = vmax.f32 %v502, 0.0
      %v603 = vmax.f32 %v507, 0.0
      %v604 = vmax.f32 %v510, 0.0
      %v605 = vmax.f32 %v515, 0.0
      %v606 = vmax.f32 %v518, 0.0
      %v607 = vmax.f32 %v523, 0.0
      %v608 = vmax.f32 %v526, 0.0
      %v609 = vmax.f32 %v531, 0.0
      %v610 = vmax.f32 %v534, 0.0
      %v611 = vmax.f32 %v539, 0.0
      %v612 = vmax.f32 %v542, 0.0
      %v613 = vmax.f32 %v547, 0.0
      %v614 = vmax.f32 %v550, 0.0
      %v615 = vmax.f32 %v555, 0.0
      %v616 = vmax.f32 %v558, 0.0
      %v617 = vmax.f32 %v563, 0.0
      %v618 = vmax.f32 %v566, 0.0
      %v619 = vmax.f32 %v571, 0.0
      %v620 = vmax.f32 %v574, 0.0
      %v621 = vmax.f32 %v579, 0.0
      %v622 = vmax.f32 %v582, 0.0
      %v623 = vmax.f32 %v587, 0.0
      %v624 = vmax.f32 %v590, 0.0
      %v625 = vld [vmem:[%s3] sm:$0x1]
      %v627 = vlaneseq
      %v628 = vshrl.u32 %v627, 7
      %v629 = vsub.s32 0, %v628
      %v630 = vrot.slane %v625, %v629
      %v632 = vmul.f32 %v593, %v630
      %v633 = vmul.f32 %v594, %v630
      %v634 = vmul.f32 %v595, %v630
      %v635 = vmul.f32 %v596, %v630
      %v636 = vmul.f32 %v597, %v630
      %v637 = vmul.f32 %v598, %v630
      %v638 = vmul.f32 %v599, %v630
      %v639 = vmul.f32 %v600, %v630
      %v640 = vmul.f32 %v601, %v630
      %v641 = vmul.f32 %v602, %v630
      %v642 = vmul.f32 %v603, %v630
      %v643 = vmul.f32 %v604, %v630
      %v644 = vmul.f32 %v605, %v630
      %v645 = vmul.f32 %v606, %v630
      %v646 = vmul.f32 %v607, %v630
      %v647 = vmul.f32 %v608, %v630
      %v648 = vmul.f32 %v609, %v630
      %v649 = vmul.f32 %v610, %v630
      %v650 = vmul.f32 %v611, %v630
      %v651 = vmul.f32 %v612, %v630
      %v652 = vmul.f32 %v613, %v630
      %v653 = vmul.f32 %v614, %v630
      %v654 = vmul.f32 %v615, %v630
      %v655 = vmul.f32 %v616, %v630
      %v656 = vmul.f32 %v617, %v630
      %v657 = vmul.f32 %v618, %v630
      %v658 = vmul.f32 %v619, %v630
      %v659 = vmul.f32 %v620, %v630
      %v660 = vmul.f32 %v621, %v630
      %v661 = vmul.f32 %v622, %v630
      %v662 = vmul.f32 %v623, %v630
      %v663 = vmul.f32 %v624, %v630
      %v664 = vsel %vm383, %v632, 0.0
      %665 = vadd.xlane.f32.xlu0 %v664
      %v666 = vpop.xlane.xlu0 %665
      %v667 = vsel %vm383, %v633, 0.0
      %668 = vadd.xlane.f32.xlu0 %v667
      %v669 = vpop.xlane.xlu0 %668
      %v670 = vsel %vm383, %v634, 0.0
      %671 = vadd.xlane.f32.xlu0 %v670
      %v672 = vpop.xlane.xlu0 %671
      %v673 = vsel %vm383, %v635, 0.0
      %674 = vadd.xlane.f32.xlu0 %v673
      %v675 = vpop.xlane.xlu0 %674
      %v676 = vsel %vm383, %v636, 0.0
      %677 = vadd.xlane.f32.xlu0 %v676
      %v678 = vpop.xlane.xlu0 %677
      %v679 = vsel %vm383, %v637, 0.0
      %680 = vadd.xlane.f32.xlu0 %v679
      %v681 = vpop.xlane.xlu0 %680
      %v682 = vsel %vm383, %v638, 0.0
      %683 = vadd.xlane.f32.xlu0 %v682
      %v684 = vpop.xlane.xlu0 %683
      %v685 = vsel %vm383, %v639, 0.0
      %686 = vadd.xlane.f32.xlu0 %v685
      %v687 = vpop.xlane.xlu0 %686
      %v688 = vsel %vm383, %v640, 0.0
      %689 = vadd.xlane.f32.xlu0 %v688
      %v690 = vpop.xlane.xlu0 %689
      %v691 = vsel %vm383, %v641, 0.0
      %692 = vadd.xlane.f32.xlu0 %v691
      %v693 = vpop.xlane.xlu0 %692
      %v694 = vsel %vm383, %v642, 0.0
      %695 = vadd.xlane.f32.xlu0 %v694
      %v696 = vpop.xlane.xlu0 %695
      %v697 = vsel %vm383, %v643, 0.0
      %698 = vadd.xlane.f32.xlu0 %v697
      %v699 = vpop.xlane.xlu0 %698
      %v700 = vsel %vm383, %v644, 0.0
      %701 = vadd.xlane.f32.xlu0 %v700
      %v702 = vpop.xlane.xlu0 %701
      %v703 = vsel %vm383, %v645, 0.0
      %704 = vadd.xlane.f32.xlu0 %v703
      %v705 = vpop.xlane.xlu0 %704
      %v706 = vsel %vm383, %v646, 0.0
      %707 = vadd.xlane.f32.xlu0 %v706
      %v708 = vpop.xlane.xlu0 %707
      %v709 = vsel %vm383, %v647, 0.0
      %710 = vadd.xlane.f32.xlu0 %v709
      %v711 = vpop.xlane.xlu0 %710
      %v712 = vsel %vm383, %v648, 0.0
      %713 = vadd.xlane.f32.xlu0 %v712
      %v714 = vpop.xlane.xlu0 %713
      %v715 = vsel %vm383, %v649, 0.0
      %716 = vadd.xlane.f32.xlu0 %v715
      %v717 = vpop.xlane.xlu0 %716
      %v718 = vsel %vm383, %v650, 0.0
      %719 = vadd.xlane.f32.xlu0 %v718
      %v720 = vpop.xlane.xlu0 %719
      %v721 = vsel %vm383, %v651, 0.0
      %722 = vadd.xlane.f32.xlu0 %v721
      %v723 = vpop.xlane.xlu0 %722
      %v724 = vsel %vm383, %v652, 0.0
      %725 = vadd.xlane.f32.xlu0 %v724
      %v726 = vpop.xlane.xlu0 %725
      %v727 = vsel %vm383, %v653, 0.0
      %728 = vadd.xlane.f32.xlu0 %v727
      %v729 = vpop.xlane.xlu0 %728
      %v730 = vsel %vm383, %v654, 0.0
      %731 = vadd.xlane.f32.xlu0 %v730
      %v732 = vpop.xlane.xlu0 %731
      %v733 = vsel %vm383, %v655, 0.0
      %734 = vadd.xlane.f32.xlu0 %v733
      %v735 = vpop.xlane.xlu0 %734
      %v736 = vsel %vm383, %v656, 0.0
      %737 = vadd.xlane.f32.xlu0 %v736
      %v738 = vpop.xlane.xlu0 %737
      %v739 = vsel %vm383, %v657, 0.0
      %740 = vadd.xlane.f32.xlu0 %v739
      %v741 = vpop.xlane.xlu0 %740
      %v742 = vsel %vm383, %v658, 0.0
      %743 = vadd.xlane.f32.xlu0 %v742
      %v744 = vpop.xlane.xlu0 %743
      %v745 = vsel %vm383, %v659, 0.0
      %746 = vadd.xlane.f32.xlu0 %v745
      %v747 = vpop.xlane.xlu0 %746
      %v748 = vsel %vm383, %v660, 0.0
      %749 = vadd.xlane.f32.xlu0 %v748
      %v750 = vpop.xlane.xlu0 %749
      %v751 = vsel %vm383, %v661, 0.0
      %752 = vadd.xlane.f32.xlu0 %v751
      %v753 = vpop.xlane.xlu0 %752
      %v754 = vsel %vm383, %v662, 0.0
      %755 = vadd.xlane.f32.xlu0 %v754
      %v756 = vpop.xlane.xlu0 %755
      %v757 = vsel %vm383, %v663, 0.0
      %758 = vadd.xlane.f32.xlu0 %v757
      %v759 = vpop.xlane.xlu0 %758
      %s760 = sld [smem:[#allocation2]]
      %v761 = vstv %s760
      %v762 = vadd.f32 %v666, %v761
      %v763 = vadd.f32 %v669, %v761
      %v764 = vadd.f32 %v672, %v761
      %v765 = vadd.f32 %v675, %v761
      %v766 = vadd.f32 %v678, %v761
      %v767 = vadd.f32 %v681, %v761
      %v768 = vadd.f32 %v684, %v761
      %v769 = vadd.f32 %v687, %v761
      %v770 = vadd.f32 %v690, %v761
      %v771 = vadd.f32 %v693, %v761
      %v772 = vadd.f32 %v696, %v761
      %v773 = vadd.f32 %v699, %v761
      %v774 = vadd.f32 %v702, %v761
      %v775 = vadd.f32 %v705, %v761
      %v776 = vadd.f32 %v708, %v761
      %v777 = vadd.f32 %v711, %v761
      %v778 = vadd.f32 %v714, %v761
      %v779 = vadd.f32 %v717, %v761
      %v780 = vadd.f32 %v720, %v761
      %v781 = vadd.f32 %v723, %v761
      %v782 = vadd.f32 %v726, %v761
      %v783 = vadd.f32 %v729, %v761
      %v784 = vadd.f32 %v732, %v761
      %v785 = vadd.f32 %v735, %v761
      %v786 = vadd.f32 %v738, %v761
      %v787 = vadd.f32 %v741, %v761
      %v788 = vadd.f32 %v744, %v761
      %v789 = vadd.f32 %v747, %v761
      %v790 = vadd.f32 %v750, %v761
      %v791 = vadd.f32 %v753, %v761
      %v792 = vadd.f32 %v756, %v761
      %v793 = vadd.f32 %v759, %v761
      %v826 = vlaneseq
      %v827 = vshrl.u32 %v826, 7
      %v828 = vsub.s32 0, %v827
      %v829 = vrot.slane %v762, %v828
      %v830 = vlaneseq
      %v831 = vshrl.u32 %v830, 7
      %v832 = vsub.s32 1, %v831
      %v833 = vrot.slane %v762, %v832
      %v834 = vlaneseq
      %v835 = vshrl.u32 %v834, 7
      %v836 = vsub.s32 2, %v835
      %v837 = vrot.slane %v762, %v836
      %v838 = vlaneseq
      %v839 = vshrl.u32 %v838, 7
      %v840 = vsub.s32 3, %v839
      %v841 = vrot.slane %v762, %v840
      %v842 = vlaneseq
      %v843 = vshrl.u32 %v842, 7
      %v844 = vsub.s32 4, %v843
      %v845 = vrot.slane %v762, %v844
      %v846 = vlaneseq
      %v847 = vshrl.u32 %v846, 7
      %v848 = vsub.s32 5, %v847
      %v849 = vrot.slane %v762, %v848
      %v850 = vlaneseq
      %v851 = vshrl.u32 %v850, 7
      %v852 = vsub.s32 6, %v851
      %v853 = vrot.slane %v762, %v852
      %v854 = vlaneseq
      %v855 = vshrl.u32 %v854, 7
      %v856 = vsub.s32 7, %v855
      %v857 = vrot.slane %v762, %v856
      %v858 = vlaneseq
      %v859 = vshrl.u32 %v858, 7
      %v860 = vsub.s32 0, %v859
      %v861 = vrot.slane %v763, %v860
      %v862 = vlaneseq
      %v863 = vshrl.u32 %v862, 7
      %v864 = vsub.s32 1, %v863
      %v865 = vrot.slane %v763, %v864
      %v866 = vlaneseq
      %v867 = vshrl.u32 %v866, 7
      %v868 = vsub.s32 2, %v867
      %v869 = vrot.slane %v763, %v868
      %v870 = vlaneseq
      %v871 = vshrl.u32 %v870, 7
      %v872 = vsub.s32 3, %v871
      %v873 = vrot.slane %v763, %v872
      %v874 = vlaneseq
      %v875 = vshrl.u32 %v874, 7
      %v876 = vsub.s32 4, %v875
      %v877 = vrot.slane %v763, %v876
      %v878 = vlaneseq
      %v879 = vshrl.u32 %v878, 7
      %v880 = vsub.s32 5, %v879
      %v881 = vrot.slane %v763, %v880
      %v882 = vlaneseq
      %v883 = vshrl.u32 %v882, 7
      %v884 = vsub.s32 6, %v883
      %v885 = vrot.slane %v763, %v884
      %v886 = vlaneseq
      %v887 = vshrl.u32 %v886, 7
      %v888 = vsub.s32 7, %v887
      %v889 = vrot.slane %v763, %v888
      %v890 = vlaneseq
      %v891 = vshrl.u32 %v890, 7
      %v892 = vsub.s32 0, %v891
      %v893 = vrot.slane %v764, %v892
      %v894 = vlaneseq
      %v895 = vshrl.u32 %v894, 7
      %v896 = vsub.s32 1, %v895
      %v897 = vrot.slane %v764, %v896
      %v898 = vlaneseq
      %v899 = vshrl.u32 %v898, 7
      %v900 = vsub.s32 2, %v899
      %v901 = vrot.slane %v764, %v900
      %v902 = vlaneseq
      %v903 = vshrl.u32 %v902, 7
      %v904 = vsub.s32 3, %v903
      %v905 = vrot.slane %v764, %v904
      %v906 = vlaneseq
      %v907 = vshrl.u32 %v906, 7
      %v908 = vsub.s32 4, %v907
      %v909 = vrot.slane %v764, %v908
      %v910 = vlaneseq
      %v911 = vshrl.u32 %v910, 7
      %v912 = vsub.s32 5, %v911
      %v913 = vrot.slane %v764, %v912
      %v914 = vlaneseq
      %v915 = vshrl.u32 %v914, 7
      %v916 = vsub.s32 6, %v915
      %v917 = vrot.slane %v764, %v916
      %v918 = vlaneseq
      %v919 = vshrl.u32 %v918, 7
      %v920 = vsub.s32 7, %v919
      %v921 = vrot.slane %v764, %v920
      %v922 = vlaneseq
      %v923 = vshrl.u32 %v922, 7
      %v924 = vsub.s32 0, %v923
      %v925 = vrot.slane %v765, %v924
      %v926 = vlaneseq
      %v927 = vshrl.u32 %v926, 7
      %v928 = vsub.s32 1, %v927
      %v929 = vrot.slane %v765, %v928
      %v930 = vlaneseq
      %v931 = vshrl.u32 %v930, 7
      %v932 = vsub.s32 2, %v931
      %v933 = vrot.slane %v765, %v932
      %v934 = vlaneseq
      %v935 = vshrl.u32 %v934, 7
      %v936 = vsub.s32 3, %v935
      %v937 = vrot.slane %v765, %v936
      %v938 = vlaneseq
      %v939 = vshrl.u32 %v938, 7
      %v940 = vsub.s32 4, %v939
      %v941 = vrot.slane %v765, %v940
      %v942 = vlaneseq
      %v943 = vshrl.u32 %v942, 7
      %v944 = vsub.s32 5, %v943
      %v945 = vrot.slane %v765, %v944
      %v946 = vlaneseq
      %v947 = vshrl.u32 %v946, 7
      %v948 = vsub.s32 6, %v947
      %v949 = vrot.slane %v765, %v948
      %v950 = vlaneseq
      %v951 = vshrl.u32 %v950, 7
      %v952 = vsub.s32 7, %v951
      %v953 = vrot.slane %v765, %v952
      %v954 = vlaneseq
      %v955 = vshrl.u32 %v954, 7
      %v956 = vsub.s32 0, %v955
      %v957 = vrot.slane %v766, %v956
      %v958 = vlaneseq
      %v959 = vshrl.u32 %v958, 7
      %v960 = vsub.s32 1, %v959
      %v961 = vrot.slane %v766, %v960
      %v962 = vlaneseq
      %v963 = vshrl.u32 %v962, 7
      %v964 = vsub.s32 2, %v963
      %v965 = vrot.slane %v766, %v964
      %v966 = vlaneseq
      %v967 = vshrl.u32 %v966, 7
      %v968 = vsub.s32 3, %v967
      %v969 = vrot.slane %v766, %v968
      %v970 = vlaneseq
      %v971 = vshrl.u32 %v970, 7
      %v972 = vsub.s32 4, %v971
      %v973 = vrot.slane %v766, %v972
      %v974 = vlaneseq
      %v975 = vshrl.u32 %v974, 7
      %v976 = vsub.s32 5, %v975
      %v977 = vrot.slane %v766, %v976
      %v978 = vlaneseq
      %v979 = vshrl.u32 %v978, 7
      %v980 = vsub.s32 6, %v979
      %v981 = vrot.slane %v766, %v980
      %v982 = vlaneseq
      %v983 = vshrl.u32 %v982, 7
      %v984 = vsub.s32 7, %v983
      %v985 = vrot.slane %v766, %v984
      %v986 = vlaneseq
      %v987 = vshrl.u32 %v986, 7
      %v988 = vsub.s32 0, %v987
      %v989 = vrot.slane %v767, %v988
      %v990 = vlaneseq
      %v991 = vshrl.u32 %v990, 7
      %v992 = vsub.s32 1, %v991
      %v993 = vrot.slane %v767, %v992
      %v994 = vlaneseq
      %v995 = vshrl.u32 %v994, 7
      %v996 = vsub.s32 2, %v995
      %v997 = vrot.slane %v767, %v996
      %v998 = vlaneseq
      %v999 = vshrl.u32 %v998, 7
      %v1000 = vsub.s32 3, %v999
      %v1001 = vrot.slane %v767, %v1000
      %v1002 = vlaneseq
      %v1003 = vshrl.u32 %v1002, 7
      %v1004 = vsub.s32 4, %v1003
      %v1005 = vrot.slane %v767, %v1004
      %v1006 = vlaneseq
      %v1007 = vshrl.u32 %v1006, 7
      %v1008 = vsub.s32 5, %v1007
      %v1009 = vrot.slane %v767, %v1008
      %v1010 = vlaneseq
      %v1011 = vshrl.u32 %v1010, 7
      %v1012 = vsub.s32 6, %v1011
      %v1013 = vrot.slane %v767, %v1012
      %v1014 = vlaneseq
      %v1015 = vshrl.u32 %v1014, 7
      %v1016 = vsub.s32 7, %v1015
      %v1017 = vrot.slane %v767, %v1016
      %v1018 = vlaneseq
      %v1019 = vshrl.u32 %v1018, 7
      %v1020 = vsub.s32 0, %v1019
      %v1021 = vrot.slane %v768, %v1020
      %v1022 = vlaneseq
      %v1023 = vshrl.u32 %v1022, 7
      %v1024 = vsub.s32 1, %v1023
      %v1025 = vrot.slane %v768, %v1024
      %v1026 = vlaneseq
      %v1027 = vshrl.u32 %v1026, 7
      %v1028 = vsub.s32 2, %v1027
      %v1029 = vrot.slane %v768, %v1028
      %v1030 = vlaneseq
      %v1031 = vshrl.u32 %v1030, 7
      %v1032 = vsub.s32 3, %v1031
      %v1033 = vrot.slane %v768, %v1032
      %v1034 = vlaneseq
      %v1035 = vshrl.u32 %v1034, 7
      %v1036 = vsub.s32 4, %v1035
      %v1037 = vrot.slane %v768, %v1036
      %v1038 = vlaneseq
      %v1039 = vshrl.u32 %v1038, 7
      %v1040 = vsub.s32 5, %v1039
      %v1041 = vrot.slane %v768, %v1040
      %v1042 = vlaneseq
      %v1043 = vshrl.u32 %v1042, 7
      %v1044 = vsub.s32 6, %v1043
      %v1045 = vrot.slane %v768, %v1044
      %v1046 = vlaneseq
      %v1047 = vshrl.u32 %v1046, 7
      %v1048 = vsub.s32 7, %v1047
      %v1049 = vrot.slane %v768, %v1048
      %v1050 = vlaneseq
      %v1051 = vshrl.u32 %v1050, 7
      %v1052 = vsub.s32 0, %v1051
      %v1053 = vrot.slane %v769, %v1052
      %v1054 = vlaneseq
      %v1055 = vshrl.u32 %v1054, 7
      %v1056 = vsub.s32 1, %v1055
      %v1057 = vrot.slane %v769, %v1056
      %v1058 = vlaneseq
      %v1059 = vshrl.u32 %v1058, 7
      %v1060 = vsub.s32 2, %v1059
      %v1061 = vrot.slane %v769, %v1060
      %v1062 = vlaneseq
      %v1063 = vshrl.u32 %v1062, 7
      %v1064 = vsub.s32 3, %v1063
      %v1065 = vrot.slane %v769, %v1064
      %v1066 = vlaneseq
      %v1067 = vshrl.u32 %v1066, 7
      %v1068 = vsub.s32 4, %v1067
      %v1069 = vrot.slane %v769, %v1068
      %v1070 = vlaneseq
      %v1071 = vshrl.u32 %v1070, 7
      %v1072 = vsub.s32 5, %v1071
      %v1073 = vrot.slane %v769, %v1072
      %v1074 = vlaneseq
      %v1075 = vshrl.u32 %v1074, 7
      %v1076 = vsub.s32 6, %v1075
      %v1077 = vrot.slane %v769, %v1076
      %v1078 = vlaneseq
      %v1079 = vshrl.u32 %v1078, 7
      %v1080 = vsub.s32 7, %v1079
      %v1081 = vrot.slane %v769, %v1080
      %v1082 = vlaneseq
      %v1083 = vshrl.u32 %v1082, 7
      %v1084 = vsub.s32 0, %v1083
      %v1085 = vrot.slane %v770, %v1084
      %v1086 = vlaneseq
      %v1087 = vshrl.u32 %v1086, 7
      %v1088 = vsub.s32 1, %v1087
      %v1089 = vrot.slane %v770, %v1088
      %v1090 = vlaneseq
      %v1091 = vshrl.u32 %v1090, 7
      %v1092 = vsub.s32 2, %v1091
      %v1093 = vrot.slane %v770, %v1092
      %v1094 = vlaneseq
      %v1095 = vshrl.u32 %v1094, 7
      %v1096 = vsub.s32 3, %v1095
      %v1097 = vrot.slane %v770, %v1096
      %v1098 = vlaneseq
      %v1099 = vshrl.u32 %v1098, 7
      %v1100 = vsub.s32 4, %v1099
      %v1101 = vrot.slane %v770, %v1100
      %v1102 = vlaneseq
      %v1103 = vshrl.u32 %v1102, 7
      %v1104 = vsub.s32 5, %v1103
      %v1105 = vrot.slane %v770, %v1104
      %v1106 = vlaneseq
      %v1107 = vshrl.u32 %v1106, 7
      %v1108 = vsub.s32 6, %v1107
      %v1109 = vrot.slane %v770, %v1108
      %v1110 = vlaneseq
      %v1111 = vshrl.u32 %v1110, 7
      %v1112 = vsub.s32 7, %v1111
      %v1113 = vrot.slane %v770, %v1112
      %v1114 = vlaneseq
      %v1115 = vshrl.u32 %v1114, 7
      %v1116 = vsub.s32 0, %v1115
      %v1117 = vrot.slane %v771, %v1116
      %v1118 = vlaneseq
      %v1119 = vshrl.u32 %v1118, 7
      %v1120 = vsub.s32 1, %v1119
      %v1121 = vrot.slane %v771, %v1120
      %v1122 = vlaneseq
      %v1123 = vshrl.u32 %v1122, 7
      %v1124 = vsub.s32 2, %v1123
      %v1125 = vrot.slane %v771, %v1124
      %v1126 = vlaneseq
      %v1127 = vshrl.u32 %v1126, 7
      %v1128 = vsub.s32 3, %v1127
      %v1129 = vrot.slane %v771, %v1128
      %v1130 = vlaneseq
      %v1131 = vshrl.u32 %v1130, 7
      %v1132 = vsub.s32 4, %v1131
      %v1133 = vrot.slane %v771, %v1132
      %v1134 = vlaneseq
      %v1135 = vshrl.u32 %v1134, 7
      %v1136 = vsub.s32 5, %v1135
      %v1137 = vrot.slane %v771, %v1136
      %v1138 = vlaneseq
      %v1139 = vshrl.u32 %v1138, 7
      %v1140 = vsub.s32 6, %v1139
      %v1141 = vrot.slane %v771, %v1140
      %v1142 = vlaneseq
      %v1143 = vshrl.u32 %v1142, 7
      %v1144 = vsub.s32 7, %v1143
      %v1145 = vrot.slane %v771, %v1144
      %v1146 = vlaneseq
      %v1147 = vshrl.u32 %v1146, 7
      %v1148 = vsub.s32 0, %v1147
      %v1149 = vrot.slane %v772, %v1148
      %v1150 = vlaneseq
      %v1151 = vshrl.u32 %v1150, 7
      %v1152 = vsub.s32 1, %v1151
      %v1153 = vrot.slane %v772, %v1152
      %v1154 = vlaneseq
      %v1155 = vshrl.u32 %v1154, 7
      %v1156 = vsub.s32 2, %v1155
      %v1157 = vrot.slane %v772, %v1156
      %v1158 = vlaneseq
      %v1159 = vshrl.u32 %v1158, 7
      %v1160 = vsub.s32 3, %v1159
      %v1161 = vrot.slane %v772, %v1160
      %v1162 = vlaneseq
      %v1163 = vshrl.u32 %v1162, 7
      %v1164 = vsub.s32 4, %v1163
      %v1165 = vrot.slane %v772, %v1164
      %v1166 = vlaneseq
      %v1167 = vshrl.u32 %v1166, 7
      %v1168 = vsub.s32 5, %v1167
      %v1169 = vrot.slane %v772, %v1168
      %v1170 = vlaneseq
      %v1171 = vshrl.u32 %v1170, 7
      %v1172 = vsub.s32 6, %v1171
      %v1173 = vrot.slane %v772, %v1172
      %v1174 = vlaneseq
      %v1175 = vshrl.u32 %v1174, 7
      %v1176 = vsub.s32 7, %v1175
      %v1177 = vrot.slane %v772, %v1176
      %v1178 = vlaneseq
      %v1179 = vshrl.u32 %v1178, 7
      %v1180 = vsub.s32 0, %v1179
      %v1181 = vrot.slane %v773, %v1180
      %v1182 = vlaneseq
      %v1183 = vshrl.u32 %v1182, 7
      %v1184 = vsub.s32 1, %v1183
      %v1185 = vrot.slane %v773, %v1184
      %v1186 = vlaneseq
      %v1187 = vshrl.u32 %v1186, 7
      %v1188 = vsub.s32 2, %v1187
      %v1189 = vrot.slane %v773, %v1188
      %v1190 = vlaneseq
      %v1191 = vshrl.u32 %v1190, 7
      %v1192 = vsub.s32 3, %v1191
      %v1193 = vrot.slane %v773, %v1192
      %v1194 = vlaneseq
      %v1195 = vshrl.u32 %v1194, 7
      %v1196 = vsub.s32 4, %v1195
      %v1197 = vrot.slane %v773, %v1196
      %v1198 = vlaneseq
      %v1199 = vshrl.u32 %v1198, 7
      %v1200 = vsub.s32 5, %v1199
      %v1201 = vrot.slane %v773, %v1200
      %v1202 = vlaneseq
      %v1203 = vshrl.u32 %v1202, 7
      %v1204 = vsub.s32 6, %v1203
      %v1205 = vrot.slane %v773, %v1204
      %v1206 = vlaneseq
      %v1207 = vshrl.u32 %v1206, 7
      %v1208 = vsub.s32 7, %v1207
      %v1209 = vrot.slane %v773, %v1208
      %v1210 = vlaneseq
      %v1211 = vshrl.u32 %v1210, 7
      %v1212 = vsub.s32 0, %v1211
      %v1213 = vrot.slane %v774, %v1212
      %v1214 = vlaneseq
      %v1215 = vshrl.u32 %v1214, 7
      %v1216 = vsub.s32 1, %v1215
      %v1217 = vrot.slane %v774, %v1216
      %v1218 = vlaneseq
      %v1219 = vshrl.u32 %v1218, 7
      %v1220 = vsub.s32 2, %v1219
      %v1221 = vrot.slane %v774, %v1220
      %v1222 = vlaneseq
      %v1223 = vshrl.u32 %v1222, 7
      %v1224 = vsub.s32 3, %v1223
      %v1225 = vrot.slane %v774, %v1224
      %v1226 = vlaneseq
      %v1227 = vshrl.u32 %v1226, 7
      %v1228 = vsub.s32 4, %v1227
      %v1229 = vrot.slane %v774, %v1228
      %v1230 = vlaneseq
      %v1231 = vshrl.u32 %v1230, 7
      %v1232 = vsub.s32 5, %v1231
      %v1233 = vrot.slane %v774, %v1232
      %v1234 = vlaneseq
      %v1235 = vshrl.u32 %v1234, 7
      %v1236 = vsub.s32 6, %v1235
      %v1237 = vrot.slane %v774, %v1236
      %v1238 = vlaneseq
      %v1239 = vshrl.u32 %v1238, 7
      %v1240 = vsub.s32 7, %v1239
      %v1241 = vrot.slane %v774, %v1240
      %v1242 = vlaneseq
      %v1243 = vshrl.u32 %v1242, 7
      %v1244 = vsub.s32 0, %v1243
      %v1245 = vrot.slane %v775, %v1244
      %v1246 = vlaneseq
      %v1247 = vshrl.u32 %v1246, 7
      %v1248 = vsub.s32 1, %v1247
      %v1249 = vrot.slane %v775, %v1248
      %v1250 = vlaneseq
      %v1251 = vshrl.u32 %v1250, 7
      %v1252 = vsub.s32 2, %v1251
      %v1253 = vrot.slane %v775, %v1252
      %v1254 = vlaneseq
      %v1255 = vshrl.u32 %v1254, 7
      %v1256 = vsub.s32 3, %v1255
      %v1257 = vrot.slane %v775, %v1256
      %v1258 = vlaneseq
      %v1259 = vshrl.u32 %v1258, 7
      %v1260 = vsub.s32 4, %v1259
      %v1261 = vrot.slane %v775, %v1260
      %v1262 = vlaneseq
      %v1263 = vshrl.u32 %v1262, 7
      %v1264 = vsub.s32 5, %v1263
      %v1265 = vrot.slane %v775, %v1264
      %v1266 = vlaneseq
      %v1267 = vshrl.u32 %v1266, 7
      %v1268 = vsub.s32 6, %v1267
      %v1269 = vrot.slane %v775, %v1268
      %v1270 = vlaneseq
      %v1271 = vshrl.u32 %v1270, 7
      %v1272 = vsub.s32 7, %v1271
      %v1273 = vrot.slane %v775, %v1272
      %v1274 = vlaneseq
      %v1275 = vshrl.u32 %v1274, 7
      %v1276 = vsub.s32 0, %v1275
      %v1277 = vrot.slane %v776, %v1276
      %v1278 = vlaneseq
      %v1279 = vshrl.u32 %v1278, 7
      %v1280 = vsub.s32 1, %v1279
      %v1281 = vrot.slane %v776, %v1280
      %v1282 = vlaneseq
      %v1283 = vshrl.u32 %v1282, 7
      %v1284 = vsub.s32 2, %v1283
      %v1285 = vrot.slane %v776, %v1284
      %v1286 = vlaneseq
      %v1287 = vshrl.u32 %v1286, 7
      %v1288 = vsub.s32 3, %v1287
      %v1289 = vrot.slane %v776, %v1288
      %v1290 = vlaneseq
      %v1291 = vshrl.u32 %v1290, 7
      %v1292 = vsub.s32 4, %v1291
      %v1293 = vrot.slane %v776, %v1292
      %v1294 = vlaneseq
      %v1295 = vshrl.u32 %v1294, 7
      %v1296 = vsub.s32 5, %v1295
      %v1297 = vrot.slane %v776, %v1296
      %v1298 = vlaneseq
      %v1299 = vshrl.u32 %v1298, 7
      %v1300 = vsub.s32 6, %v1299
      %v1301 = vrot.slane %v776, %v1300
      %v1302 = vlaneseq
      %v1303 = vshrl.u32 %v1302, 7
      %v1304 = vsub.s32 7, %v1303
      %v1305 = vrot.slane %v776, %v1304
      %v1306 = vlaneseq
      %v1307 = vshrl.u32 %v1306, 7
      %v1308 = vsub.s32 0, %v1307
      %v1309 = vrot.slane %v777, %v1308
      %v1310 = vlaneseq
      %v1311 = vshrl.u32 %v1310, 7
      %v1312 = vsub.s32 1, %v1311
      %v1313 = vrot.slane %v777, %v1312
      %v1314 = vlaneseq
      %v1315 = vshrl.u32 %v1314, 7
      %v1316 = vsub.s32 2, %v1315
      %v1317 = vrot.slane %v777, %v1316
      %v1318 = vlaneseq
      %v1319 = vshrl.u32 %v1318, 7
      %v1320 = vsub.s32 3, %v1319
      %v1321 = vrot.slane %v777, %v1320
      %v1322 = vlaneseq
      %v1323 = vshrl.u32 %v1322, 7
      %v1324 = vsub.s32 4, %v1323
      %v1325 = vrot.slane %v777, %v1324
      %v1326 = vlaneseq
      %v1327 = vshrl.u32 %v1326, 7
      %v1328 = vsub.s32 5, %v1327
      %v1329 = vrot.slane %v777, %v1328
      %v1330 = vlaneseq
      %v1331 = vshrl.u32 %v1330, 7
      %v1332 = vsub.s32 6, %v1331
      %v1333 = vrot.slane %v777, %v1332
      %v1334 = vlaneseq
      %v1335 = vshrl.u32 %v1334, 7
      %v1336 = vsub.s32 7, %v1335
      %v1337 = vrot.slane %v777, %v1336
      %v1338 = vlaneseq
      %v1339 = vshrl.u32 %v1338, 7
      %v1340 = vsub.s32 0, %v1339
      %v1341 = vrot.slane %v778, %v1340
      %v1342 = vlaneseq
      %v1343 = vshrl.u32 %v1342, 7
      %v1344 = vsub.s32 1, %v1343
      %v1345 = vrot.slane %v778, %v1344
      %v1346 = vlaneseq
      %v1347 = vshrl.u32 %v1346, 7
      %v1348 = vsub.s32 2, %v1347
      %v1349 = vrot.slane %v778, %v1348
      %v1350 = vlaneseq
      %v1351 = vshrl.u32 %v1350, 7
      %v1352 = vsub.s32 3, %v1351
      %v1353 = vrot.slane %v778, %v1352
      %v1354 = vlaneseq
      %v1355 = vshrl.u32 %v1354, 7
      %v1356 = vsub.s32 4, %v1355
      %v1357 = vrot.slane %v778, %v1356
      %v1358 = vlaneseq
      %v1359 = vshrl.u32 %v1358, 7
      %v1360 = vsub.s32 5, %v1359
      %v1361 = vrot.slane %v778, %v1360
      %v1362 = vlaneseq
      %v1363 = vshrl.u32 %v1362, 7
      %v1364 = vsub.s32 6, %v1363
      %v1365 = vrot.slane %v778, %v1364
      %v1366 = vlaneseq
      %v1367 = vshrl.u32 %v1366, 7
      %v1368 = vsub.s32 7, %v1367
      %v1369 = vrot.slane %v778, %v1368
      %v1370 = vlaneseq
      %v1371 = vshrl.u32 %v1370, 7
      %v1372 = vsub.s32 0, %v1371
      %v1373 = vrot.slane %v779, %v1372
      %v1374 = vlaneseq
      %v1375 = vshrl.u32 %v1374, 7
      %v1376 = vsub.s32 1, %v1375
      %v1377 = vrot.slane %v779, %v1376
      %v1378 = vlaneseq
      %v1379 = vshrl.u32 %v1378, 7
      %v1380 = vsub.s32 2, %v1379
      %v1381 = vrot.slane %v779, %v1380
      %v1382 = vlaneseq
      %v1383 = vshrl.u32 %v1382, 7
      %v1384 = vsub.s32 3, %v1383
      %v1385 = vrot.slane %v779, %v1384
      %v1386 = vlaneseq
      %v1387 = vshrl.u32 %v1386, 7
      %v1388 = vsub.s32 4, %v1387
      %v1389 = vrot.slane %v779, %v1388
      %v1390 = vlaneseq
      %v1391 = vshrl.u32 %v1390, 7
      %v1392 = vsub.s32 5, %v1391
      %v1393 = vrot.slane %v779, %v1392
      %v1394 = vlaneseq
      %v1395 = vshrl.u32 %v1394, 7
      %v1396 = vsub.s32 6, %v1395
      %v1397 = vrot.slane %v779, %v1396
      %v1398 = vlaneseq
      %v1399 = vshrl.u32 %v1398, 7
      %v1400 = vsub.s32 7, %v1399
      %v1401 = vrot.slane %v779, %v1400
      %v1402 = vlaneseq
      %v1403 = vshrl.u32 %v1402, 7
      %v1404 = vsub.s32 0, %v1403
      %v1405 = vrot.slane %v780, %v1404
      %v1406 = vlaneseq
      %v1407 = vshrl.u32 %v1406, 7
      %v1408 = vsub.s32 1, %v1407
      %v1409 = vrot.slane %v780, %v1408
      %v1410 = vlaneseq
      %v1411 = vshrl.u32 %v1410, 7
      %v1412 = vsub.s32 2, %v1411
      %v1413 = vrot.slane %v780, %v1412
      %v1414 = vlaneseq
      %v1415 = vshrl.u32 %v1414, 7
      %v1416 = vsub.s32 3, %v1415
      %v1417 = vrot.slane %v780, %v1416
      %v1418 = vlaneseq
      %v1419 = vshrl.u32 %v1418, 7
      %v1420 = vsub.s32 4, %v1419
      %v1421 = vrot.slane %v780, %v1420
      %v1422 = vlaneseq
      %v1423 = vshrl.u32 %v1422, 7
      %v1424 = vsub.s32 5, %v1423
      %v1425 = vrot.slane %v780, %v1424
      %v1426 = vlaneseq
      %v1427 = vshrl.u32 %v1426, 7
      %v1428 = vsub.s32 6, %v1427
      %v1429 = vrot.slane %v780, %v1428
      %v1430 = vlaneseq
      %v1431 = vshrl.u32 %v1430, 7
      %v1432 = vsub.s32 7, %v1431
      %v1433 = vrot.slane %v780, %v1432
      %v1434 = vlaneseq
      %v1435 = vshrl.u32 %v1434, 7
      %v1436 = vsub.s32 0, %v1435
      %v1437 = vrot.slane %v781, %v1436
      %v1438 = vlaneseq
      %v1439 = vshrl.u32 %v1438, 7
      %v1440 = vsub.s32 1, %v1439
      %v1441 = vrot.slane %v781, %v1440
      %v1442 = vlaneseq
      %v1443 = vshrl.u32 %v1442, 7
      %v1444 = vsub.s32 2, %v1443
      %v1445 = vrot.slane %v781, %v1444
      %v1446 = vlaneseq
      %v1447 = vshrl.u32 %v1446, 7
      %v1448 = vsub.s32 3, %v1447
      %v1449 = vrot.slane %v781, %v1448
      %v1450 = vlaneseq
      %v1451 = vshrl.u32 %v1450, 7
      %v1452 = vsub.s32 4, %v1451
      %v1453 = vrot.slane %v781, %v1452
      %v1454 = vlaneseq
      %v1455 = vshrl.u32 %v1454, 7
      %v1456 = vsub.s32 5, %v1455
      %v1457 = vrot.slane %v781, %v1456
      %v1458 = vlaneseq
      %v1459 = vshrl.u32 %v1458, 7
      %v1460 = vsub.s32 6, %v1459
      %v1461 = vrot.slane %v781, %v1460
      %v1462 = vlaneseq
      %v1463 = vshrl.u32 %v1462, 7
      %v1464 = vsub.s32 7, %v1463
      %v1465 = vrot.slane %v781, %v1464
      %v1466 = vlaneseq
      %v1467 = vshrl.u32 %v1466, 7
      %v1468 = vsub.s32 0, %v1467
      %v1469 = vrot.slane %v782, %v1468
      %v1470 = vlaneseq
      %v1471 = vshrl.u32 %v1470, 7
      %v1472 = vsub.s32 1, %v1471
      %v1473 = vrot.slane %v782, %v1472
      %v1474 = vlaneseq
      %v1475 = vshrl.u32 %v1474, 7
      %v1476 = vsub.s32 2, %v1475
      %v1477 = vrot.slane %v782, %v1476
      %v1478 = vlaneseq
      %v1479 = vshrl.u32 %v1478, 7
      %v1480 = vsub.s32 3, %v1479
      %v1481 = vrot.slane %v782, %v1480
      %v1482 = vlaneseq
      %v1483 = vshrl.u32 %v1482, 7
      %v1484 = vsub.s32 4, %v1483
      %v1485 = vrot.slane %v782, %v1484
      %v1486 = vlaneseq
      %v1487 = vshrl.u32 %v1486, 7
      %v1488 = vsub.s32 5, %v1487
      %v1489 = vrot.slane %v782, %v1488
      %v1490 = vlaneseq
      %v1491 = vshrl.u32 %v1490, 7
      %v1492 = vsub.s32 6, %v1491
      %v1493 = vrot.slane %v782, %v1492
      %v1494 = vlaneseq
      %v1495 = vshrl.u32 %v1494, 7
      %v1496 = vsub.s32 7, %v1495
      %v1497 = vrot.slane %v782, %v1496
      %v1498 = vlaneseq
      %v1499 = vshrl.u32 %v1498, 7
      %v1500 = vsub.s32 0, %v1499
      %v1501 = vrot.slane %v783, %v1500
      %v1502 = vlaneseq
      %v1503 = vshrl.u32 %v1502, 7
      %v1504 = vsub.s32 1, %v1503
      %v1505 = vrot.slane %v783, %v1504
      %v1506 = vlaneseq
      %v1507 = vshrl.u32 %v1506, 7
      %v1508 = vsub.s32 2, %v1507
      %v1509 = vrot.slane %v783, %v1508
      %v1510 = vlaneseq
      %v1511 = vshrl.u32 %v1510, 7
      %v1512 = vsub.s32 3, %v1511
      %v1513 = vrot.slane %v783, %v1512
      %v1514 = vlaneseq
      %v1515 = vshrl.u32 %v1514, 7
      %v1516 = vsub.s32 4, %v1515
      %v1517 = vrot.slane %v783, %v1516
      %v1518 = vlaneseq
      %v1519 = vshrl.u32 %v1518, 7
      %v1520 = vsub.s32 5, %v1519
      %v1521 = vrot.slane %v783, %v1520
      %v1522 = vlaneseq
      %v1523 = vshrl.u32 %v1522, 7
      %v1524 = vsub.s32 6, %v1523
      %v1525 = vrot.slane %v783, %v1524
      %v1526 = vlaneseq
      %v1527 = vshrl.u32 %v1526, 7
      %v1528 = vsub.s32 7, %v1527
      %v1529 = vrot.slane %v783, %v1528
      %v1530 = vlaneseq
      %v1531 = vshrl.u32 %v1530, 7
      %v1532 = vsub.s32 0, %v1531
      %v1533 = vrot.slane %v784, %v1532
      %v1534 = vlaneseq
      %v1535 = vshrl.u32 %v1534, 7
      %v1536 = vsub.s32 1, %v1535
      %v1537 = vrot.slane %v784, %v1536
      %v1538 = vlaneseq
      %v1539 = vshrl.u32 %v1538, 7
      %v1540 = vsub.s32 2, %v1539
      %v1541 = vrot.slane %v784, %v1540
      %v1542 = vlaneseq
      %v1543 = vshrl.u32 %v1542, 7
      %v1544 = vsub.s32 3, %v1543
      %v1545 = vrot.slane %v784, %v1544
      %v1546 = vlaneseq
      %v1547 = vshrl.u32 %v1546, 7
      %v1548 = vsub.s32 4, %v1547
      %v1549 = vrot.slane %v784, %v1548
      %v1550 = vlaneseq
      %v1551 = vshrl.u32 %v1550, 7
      %v1552 = vsub.s32 5, %v1551
      %v1553 = vrot.slane %v784, %v1552
      %v1554 = vlaneseq
      %v1555 = vshrl.u32 %v1554, 7
      %v1556 = vsub.s32 6, %v1555
      %v1557 = vrot.slane %v784, %v1556
      %v1558 = vlaneseq
      %v1559 = vshrl.u32 %v1558, 7
      %v1560 = vsub.s32 7, %v1559
      %v1561 = vrot.slane %v784, %v1560
      %v1562 = vlaneseq
      %v1563 = vshrl.u32 %v1562, 7
      %v1564 = vsub.s32 0, %v1563
      %v1565 = vrot.slane %v785, %v1564
      %v1566 = vlaneseq
      %v1567 = vshrl.u32 %v1566, 7
      %v1568 = vsub.s32 1, %v1567
      %v1569 = vrot.slane %v785, %v1568
      %v1570 = vlaneseq
      %v1571 = vshrl.u32 %v1570, 7
      %v1572 = vsub.s32 2, %v1571
      %v1573 = vrot.slane %v785, %v1572
      %v1574 = vlaneseq
      %v1575 = vshrl.u32 %v1574, 7
      %v1576 = vsub.s32 3, %v1575
      %v1577 = vrot.slane %v785, %v1576
      %v1578 = vlaneseq
      %v1579 = vshrl.u32 %v1578, 7
      %v1580 = vsub.s32 4, %v1579
      %v1581 = vrot.slane %v785, %v1580
      %v1582 = vlaneseq
      %v1583 = vshrl.u32 %v1582, 7
      %v1584 = vsub.s32 5, %v1583
      %v1585 = vrot.slane %v785, %v1584
      %v1586 = vlaneseq
      %v1587 = vshrl.u32 %v1586, 7
      %v1588 = vsub.s32 6, %v1587
      %v1589 = vrot.slane %v785, %v1588
      %v1590 = vlaneseq
      %v1591 = vshrl.u32 %v1590, 7
      %v1592 = vsub.s32 7, %v1591
      %v1593 = vrot.slane %v785, %v1592
      %v1594 = vlaneseq
      %v1595 = vshrl.u32 %v1594, 7
      %v1596 = vsub.s32 0, %v1595
      %v1597 = vrot.slane %v786, %v1596
      %v1598 = vlaneseq
      %v1599 = vshrl.u32 %v1598, 7
      %v1600 = vsub.s32 1, %v1599
      %v1601 = vrot.slane %v786, %v1600
      %v1602 = vlaneseq
      %v1603 = vshrl.u32 %v1602, 7
      %v1604 = vsub.s32 2, %v1603
      %v1605 = vrot.slane %v786, %v1604
      %v1606 = vlaneseq
      %v1607 = vshrl.u32 %v1606, 7
      %v1608 = vsub.s32 3, %v1607
      %v1609 = vrot.slane %v786, %v1608
      %v1610 = vlaneseq
      %v1611 = vshrl.u32 %v1610, 7
      %v1612 = vsub.s32 4, %v1611
      %v1613 = vrot.slane %v786, %v1612
      %v1614 = vlaneseq
      %v1615 = vshrl.u32 %v1614, 7
      %v1616 = vsub.s32 5, %v1615
      %v1617 = vrot.slane %v786, %v1616
      %v1618 = vlaneseq
      %v1619 = vshrl.u32 %v1618, 7
      %v1620 = vsub.s32 6, %v1619
      %v1621 = vrot.slane %v786, %v1620
      %v1622 = vlaneseq
      %v1623 = vshrl.u32 %v1622, 7
      %v1624 = vsub.s32 7, %v1623
      %v1625 = vrot.slane %v786, %v1624
      %v1626 = vlaneseq
      %v1627 = vshrl.u32 %v1626, 7
      %v1628 = vsub.s32 0, %v1627
      %v1629 = vrot.slane %v787, %v1628
      %v1630 = vlaneseq
      %v1631 = vshrl.u32 %v1630, 7
      %v1632 = vsub.s32 1, %v1631
      %v1633 = vrot.slane %v787, %v1632
      %v1634 = vlaneseq
      %v1635 = vshrl.u32 %v1634, 7
      %v1636 = vsub.s32 2, %v1635
      %v1637 = vrot.slane %v787, %v1636
      %v1638 = vlaneseq
      %v1639 = vshrl.u32 %v1638, 7
      %v1640 = vsub.s32 3, %v1639
      %v1641 = vrot.slane %v787, %v1640
      %v1642 = vlaneseq
      %v1643 = vshrl.u32 %v1642, 7
      %v1644 = vsub.s32 4, %v1643
      %v1645 = vrot.slane %v787, %v1644
      %v1646 = vlaneseq
      %v1647 = vshrl.u32 %v1646, 7
      %v1648 = vsub.s32 5, %v1647
      %v1649 = vrot.slane %v787, %v1648
      %v1650 = vlaneseq
      %v1651 = vshrl.u32 %v1650, 7
      %v1652 = vsub.s32 6, %v1651
      %v1653 = vrot.slane %v787, %v1652
      %v1654 = vlaneseq
      %v1655 = vshrl.u32 %v1654, 7
      %v1656 = vsub.s32 7, %v1655
      %v1657 = vrot.slane %v787, %v1656
      %v1658 = vlaneseq
      %v1659 = vshrl.u32 %v1658, 7
      %v1660 = vsub.s32 0, %v1659
      %v1661 = vrot.slane %v788, %v1660
      %v1662 = vlaneseq
      %v1663 = vshrl.u32 %v1662, 7
      %v1664 = vsub.s32 1, %v1663
      %v1665 = vrot.slane %v788, %v1664
      %v1666 = vlaneseq
      %v1667 = vshrl.u32 %v1666, 7
      %v1668 = vsub.s32 2, %v1667
      %v1669 = vrot.slane %v788, %v1668
      %v1670 = vlaneseq
      %v1671 = vshrl.u32 %v1670, 7
      %v1672 = vsub.s32 3, %v1671
      %v1673 = vrot.slane %v788, %v1672
      %v1674 = vlaneseq
      %v1675 = vshrl.u32 %v1674, 7
      %v1676 = vsub.s32 4, %v1675
      %v1677 = vrot.slane %v788, %v1676
      %v1678 = vlaneseq
      %v1679 = vshrl.u32 %v1678, 7
      %v1680 = vsub.s32 5, %v1679
      %v1681 = vrot.slane %v788, %v1680
      %v1682 = vlaneseq
      %v1683 = vshrl.u32 %v1682, 7
      %v1684 = vsub.s32 6, %v1683
      %v1685 = vrot.slane %v788, %v1684
      %v1686 = vlaneseq
      %v1687 = vshrl.u32 %v1686, 7
      %v1688 = vsub.s32 7, %v1687
      %v1689 = vrot.slane %v788, %v1688
      %v1690 = vlaneseq
      %v1691 = vshrl.u32 %v1690, 7
      %v1692 = vsub.s32 0, %v1691
      %v1693 = vrot.slane %v789, %v1692
      %v1694 = vlaneseq
      %v1695 = vshrl.u32 %v1694, 7
      %v1696 = vsub.s32 1, %v1695
      %v1697 = vrot.slane %v789, %v1696
      %v1698 = vlaneseq
      %v1699 = vshrl.u32 %v1698, 7
      %v1700 = vsub.s32 2, %v1699
      %v1701 = vrot.slane %v789, %v1700
      %v1702 = vlaneseq
      %v1703 = vshrl.u32 %v1702, 7
      %v1704 = vsub.s32 3, %v1703
      %v1705 = vrot.slane %v789, %v1704
      %v1706 = vlaneseq
      %v1707 = vshrl.u32 %v1706, 7
      %v1708 = vsub.s32 4, %v1707
      %v1709 = vrot.slane %v789, %v1708
      %v1710 = vlaneseq
      %v1711 = vshrl.u32 %v1710, 7
      %v1712 = vsub.s32 5, %v1711
      %v1713 = vrot.slane %v789, %v1712
      %v1714 = vlaneseq
      %v1715 = vshrl.u32 %v1714, 7
      %v1716 = vsub.s32 6, %v1715
      %v1717 = vrot.slane %v789, %v1716
      %v1718 = vlaneseq
      %v1719 = vshrl.u32 %v1718, 7
      %v1720 = vsub.s32 7, %v1719
      %v1721 = vrot.slane %v789, %v1720
      %v1722 = vlaneseq
      %v1723 = vshrl.u32 %v1722, 7
      %v1724 = vsub.s32 0, %v1723
      %v1725 = vrot.slane %v790, %v1724
      %v1726 = vlaneseq
      %v1727 = vshrl.u32 %v1726, 7
      %v1728 = vsub.s32 1, %v1727
      %v1729 = vrot.slane %v790, %v1728
      %v1730 = vlaneseq
      %v1731 = vshrl.u32 %v1730, 7
      %v1732 = vsub.s32 2, %v1731
      %v1733 = vrot.slane %v790, %v1732
      %v1734 = vlaneseq
      %v1735 = vshrl.u32 %v1734, 7
      %v1736 = vsub.s32 3, %v1735
      %v1737 = vrot.slane %v790, %v1736
      %v1738 = vlaneseq
      %v1739 = vshrl.u32 %v1738, 7
      %v1740 = vsub.s32 4, %v1739
      %v1741 = vrot.slane %v790, %v1740
      %v1742 = vlaneseq
      %v1743 = vshrl.u32 %v1742, 7
      %v1744 = vsub.s32 5, %v1743
      %v1745 = vrot.slane %v790, %v1744
      %v1746 = vlaneseq
      %v1747 = vshrl.u32 %v1746, 7
      %v1748 = vsub.s32 6, %v1747
      %v1749 = vrot.slane %v790, %v1748
      %v1750 = vlaneseq
      %v1751 = vshrl.u32 %v1750, 7
      %v1752 = vsub.s32 7, %v1751
      %v1753 = vrot.slane %v790, %v1752
      %v1754 = vlaneseq
      %v1755 = vshrl.u32 %v1754, 7
      %v1756 = vsub.s32 0, %v1755
      %v1757 = vrot.slane %v791, %v1756
      %v1758 = vlaneseq
      %v1759 = vshrl.u32 %v1758, 7
      %v1760 = vsub.s32 1, %v1759
      %v1761 = vrot.slane %v791, %v1760
      %v1762 = vlaneseq
      %v1763 = vshrl.u32 %v1762, 7
      %v1764 = vsub.s32 2, %v1763
      %v1765 = vrot.slane %v791, %v1764
      %v1766 = vlaneseq
      %v1767 = vshrl.u32 %v1766, 7
      %v1768 = vsub.s32 3, %v1767
      %v1769 = vrot.slane %v791, %v1768
      %v1770 = vlaneseq
      %v1771 = vshrl.u32 %v1770, 7
      %v1772 = vsub.s32 4, %v1771
      %v1773 = vrot.slane %v791, %v1772
      %v1774 = vlaneseq
      %v1775 = vshrl.u32 %v1774, 7
      %v1776 = vsub.s32 5, %v1775
      %v1777 = vrot.slane %v791, %v1776
      %v1778 = vlaneseq
      %v1779 = vshrl.u32 %v1778, 7
      %v1780 = vsub.s32 6, %v1779
      %v1781 = vrot.slane %v791, %v1780
      %v1782 = vlaneseq
      %v1783 = vshrl.u32 %v1782, 7
      %v1784 = vsub.s32 7, %v1783
      %v1785 = vrot.slane %v791, %v1784
      %v1786 = vlaneseq
      %v1787 = vshrl.u32 %v1786, 7
      %v1788 = vsub.s32 0, %v1787
      %v1789 = vrot.slane %v792, %v1788
      %v1790 = vlaneseq
      %v1791 = vshrl.u32 %v1790, 7
      %v1792 = vsub.s32 1, %v1791
      %v1793 = vrot.slane %v792, %v1792
      %v1794 = vlaneseq
      %v1795 = vshrl.u32 %v1794, 7
      %v1796 = vsub.s32 2, %v1795
      %v1797 = vrot.slane %v792, %v1796
      %v1798 = vlaneseq
      %v1799 = vshrl.u32 %v1798, 7
      %v1800 = vsub.s32 3, %v1799
      %v1801 = vrot.slane %v792, %v1800
      %v1802 = vlaneseq
      %v1803 = vshrl.u32 %v1802, 7
      %v1804 = vsub.s32 4, %v1803
      %v1805 = vrot.slane %v792, %v1804
      %v1806 = vlaneseq
      %v1807 = vshrl.u32 %v1806, 7
      %v1808 = vsub.s32 5, %v1807
      %v1809 = vrot.slane %v792, %v1808
      %v1810 = vlaneseq
      %v1811 = vshrl.u32 %v1810, 7
      %v1812 = vsub.s32 6, %v1811
      %v1813 = vrot.slane %v792, %v1812
      %v1814 = vlaneseq
      %v1815 = vshrl.u32 %v1814, 7
      %v1816 = vsub.s32 7, %v1815
      %v1817 = vrot.slane %v792, %v1816
      %v1818 = vlaneseq
      %v1819 = vshrl.u32 %v1818, 7
      %v1820 = vsub.s32 0, %v1819
      %v1821 = vrot.slane %v793, %v1820
      %v1822 = vlaneseq
      %v1823 = vshrl.u32 %v1822, 7
      %v1824 = vsub.s32 1, %v1823
      %v1825 = vrot.slane %v793, %v1824
      %v1826 = vlaneseq
      %v1827 = vshrl.u32 %v1826, 7
      %v1828 = vsub.s32 2, %v1827
      %v1829 = vrot.slane %v793, %v1828
      %v1830 = vlaneseq
      %v1831 = vshrl.u32 %v1830, 7
      %v1832 = vsub.s32 3, %v1831
      %v1833 = vrot.slane %v793, %v1832
      %v1834 = vlaneseq
      %v1835 = vshrl.u32 %v1834, 7
      %v1836 = vsub.s32 4, %v1835
      %v1837 = vrot.slane %v793, %v1836
      %v1838 = vlaneseq
      %v1839 = vshrl.u32 %v1838, 7
      %v1840 = vsub.s32 5, %v1839
      %v1841 = vrot.slane %v793, %v1840
      %v1842 = vlaneseq
      %v1843 = vshrl.u32 %v1842, 7
      %v1844 = vsub.s32 6, %v1843
      %v1845 = vrot.slane %v793, %v1844
      %v1846 = vlaneseq
      %v1847 = vshrl.u32 %v1846, 7
      %v1848 = vsub.s32 7, %v1847
      %v1849 = vrot.slane %v793, %v1848
      %v1850 = vcombine.low %v829, %v833
      %v1851 = vcombine.low %v837, %v841
      %v1852 = vcombine.low %v845, %v849
      %v1853 = vcombine.low %v853, %v857
      %v1855 = vunpack.c.l.s4 1966171168
      %v1856 = vunpack.c.0.s8 %v1855
      %v1857 = vlaneseq
      %v1858 = vshrl.u32 %v1857, 7
      %v1859 = vsub.s32 %v1856, %v1858
      %v1860 = vrot.slane %v1850, %v1859
      %v1862 = vunpack.c.l.s4 1966171168
      %v1863 = vunpack.c.0.s8 %v1862
      %v1864 = vlaneseq
      %v1865 = vshrl.u32 %v1864, 7
      %v1866 = vsub.s32 %v1863, %v1865
      %v1867 = vrot.slane %v1851, %v1866
      %v1869 = vunpack.c.l.s4 1966171168
      %v1870 = vunpack.c.0.s8 %v1869
      %v1871 = vlaneseq
      %v1872 = vshrl.u32 %v1871, 7
      %v1873 = vsub.s32 %v1870, %v1872
      %v1874 = vrot.slane %v1852, %v1873
      %v1876 = vunpack.c.l.s4 1966171168
      %v1877 = vunpack.c.0.s8 %v1876
      %v1878 = vlaneseq
      %v1879 = vshrl.u32 %v1878, 7
      %v1880 = vsub.s32 %v1877, %v1879
      %v1881 = vrot.slane %v1853, %v1880
      %v1882 = vcombine.low %v1860, %v1867
      %v1883 = vcombine.low %v1874, %v1881
      %v1885 = vunpack.c.l.s4 1966171168
      %v1886 = vunpack.c.0.s8 %v1885
      %v1887 = vlaneseq
      %v1888 = vshrl.u32 %v1887, 7
      %v1889 = vsub.s32 %v1886, %v1888
      %v1890 = vrot.slane %v1882, %v1889
      %v1892 = vunpack.c.l.s4 1966171168
      %v1893 = vunpack.c.0.s8 %v1892
      %v1894 = vlaneseq
      %v1895 = vshrl.u32 %v1894, 7
      %v1896 = vsub.s32 %v1893, %v1895
      %v1897 = vrot.slane %v1883, %v1896
      %v1898 = vcombine.low %v1890, %v1897
      %v1899 = vcombine.low %v861, %v865
      %v1900 = vcombine.low %v869, %v873
      %v1901 = vcombine.low %v877, %v881
      %v1902 = vcombine.low %v885, %v889
      %v1904 = vunpack.c.l.s4 1966171168
      %v1905 = vunpack.c.0.s8 %v1904
      %v1906 = vlaneseq
      %v1907 = vshrl.u32 %v1906, 7
      %v1908 = vsub.s32 %v1905, %v1907
      %v1909 = vrot.slane %v1899, %v1908
      %v1911 = vunpack.c.l.s4 1966171168
      %v1912 = vunpack.c.0.s8 %v1911
      %v1913 = vlaneseq
      %v1914 = vshrl.u32 %v1913, 7
      %v1915 = vsub.s32 %v1912, %v1914
      %v1916 = vrot.slane %v1900, %v1915
      %v1918 = vunpack.c.l.s4 1966171168
      %v1919 = vunpack.c.0.s8 %v1918
      %v1920 = vlaneseq
      %v1921 = vshrl.u32 %v1920, 7
      %v1922 = vsub.s32 %v1919, %v1921
      %v1923 = vrot.slane %v1901, %v1922
      %v1925 = vunpack.c.l.s4 1966171168
      %v1926 = vunpack.c.0.s8 %v1925
      %v1927 = vlaneseq
      %v1928 = vshrl.u32 %v1927, 7
      %v1929 = vsub.s32 %v1926, %v1928
      %v1930 = vrot.slane %v1902, %v1929
      %v1931 = vcombine.low %v1909, %v1916
      %v1932 = vcombine.low %v1923, %v1930
      %v1934 = vunpack.c.l.s4 1966171168
      %v1935 = vunpack.c.0.s8 %v1934
      %v1936 = vlaneseq
      %v1937 = vshrl.u32 %v1936, 7
      %v1938 = vsub.s32 %v1935, %v1937
      %v1939 = vrot.slane %v1931, %v1938
      %v1941 = vunpack.c.l.s4 1966171168
      %v1942 = vunpack.c.0.s8 %v1941
      %v1943 = vlaneseq
      %v1944 = vshrl.u32 %v1943, 7
      %v1945 = vsub.s32 %v1942, %v1944
      %v1946 = vrot.slane %v1932, %v1945
      %v1947 = vcombine.low %v1939, %v1946
      %v1948 = vcombine.low %v893, %v897
      %v1949 = vcombine.low %v901, %v905
      %v1950 = vcombine.low %v909, %v913
      %v1951 = vcombine.low %v917, %v921
      %v1953 = vunpack.c.l.s4 1966171168
      %v1954 = vunpack.c.0.s8 %v1953
      %v1955 = vlaneseq
      %v1956 = vshrl.u32 %v1955, 7
      %v1957 = vsub.s32 %v1954, %v1956
      %v1958 = vrot.slane %v1948, %v1957
      %v1960 = vunpack.c.l.s4 1966171168
      %v1961 = vunpack.c.0.s8 %v1960
      %v1962 = vlaneseq
      %v1963 = vshrl.u32 %v1962, 7
      %v1964 = vsub.s32 %v1961, %v1963
      %v1965 = vrot.slane %v1949, %v1964
      %v1967 = vunpack.c.l.s4 1966171168
      %v1968 = vunpack.c.0.s8 %v1967
      %v1969 = vlaneseq
      %v1970 = vshrl.u32 %v1969, 7
      %v1971 = vsub.s32 %v1968, %v1970
      %v1972 = vrot.slane %v1950, %v1971
      %v1974 = vunpack.c.l.s4 1966171168
      %v1975 = vunpack.c.0.s8 %v1974
      %v1976 = vlaneseq
      %v1977 = vshrl.u32 %v1976, 7
      %v1978 = vsub.s32 %v1975, %v1977
      %v1979 = vrot.slane %v1951, %v1978
      %v1980 = vcombine.low %v1958, %v1965
      %v1981 = vcombine.low %v1972, %v1979
      %v1983 = vunpack.c.l.s4 1966171168
      %v1984 = vunpack.c.0.s8 %v1983
      %v1985 = vlaneseq
      %v1986 = vshrl.u32 %v1985, 7
      %v1987 = vsub.s32 %v1984, %v1986
      %v1988 = vrot.slane %v1980, %v1987
      %v1990 = vunpack.c.l.s4 1966171168
      %v1991 = vunpack.c.0.s8 %v1990
      %v1992 = vlaneseq
      %v1993 = vshrl.u32 %v1992, 7
      %v1994 = vsub.s32 %v1991, %v1993
      %v1995 = vrot.slane %v1981, %v1994
      %v1996 = vcombine.low %v1988, %v1995
      %v1997 = vcombine.low %v925, %v929
      %v1998 = vcombine.low %v933, %v937
      %v1999 = vcombine.low %v941, %v945
      %v2000 = vcombine.low %v949, %v953
      %v2002 = vunpack.c.l.s4 1966171168
      %v2003 = vunpack.c.0.s8 %v2002
      %v2004 = vlaneseq
      %v2005 = vshrl.u32 %v2004, 7
      %v2006 = vsub.s32 %v2003, %v2005
      %v2007 = vrot.slane %v1997, %v2006
      %v2009 = vunpack.c.l.s4 1966171168
      %v2010 = vunpack.c.0.s8 %v2009
      %v2011 = vlaneseq
      %v2012 = vshrl.u32 %v2011, 7
      %v2013 = vsub.s32 %v2010, %v2012
      %v2014 = vrot.slane %v1998, %v2013
      %v2016 = vunpack.c.l.s4 1966171168
      %v2017 = vunpack.c.0.s8 %v2016
      %v2018 = vlaneseq
      %v2019 = vshrl.u32 %v2018, 7
      %v2020 = vsub.s32 %v2017, %v2019
      %v2021 = vrot.slane %v1999, %v2020
      %v2023 = vunpack.c.l.s4 1966171168
      %v2024 = vunpack.c.0.s8 %v2023
      %v2025 = vlaneseq
      %v2026 = vshrl.u32 %v2025, 7
      %v2027 = vsub.s32 %v2024, %v2026
      %v2028 = vrot.slane %v2000, %v2027
      %v2029 = vcombine.low %v2007, %v2014
      %v2030 = vcombine.low %v2021, %v2028
      %v2032 = vunpack.c.l.s4 1966171168
      %v2033 = vunpack.c.0.s8 %v2032
      %v2034 = vlaneseq
      %v2035 = vshrl.u32 %v2034, 7
      %v2036 = vsub.s32 %v2033, %v2035
      %v2037 = vrot.slane %v2029, %v2036
      %v2039 = vunpack.c.l.s4 1966171168
      %v2040 = vunpack.c.0.s8 %v2039
      %v2041 = vlaneseq
      %v2042 = vshrl.u32 %v2041, 7
      %v2043 = vsub.s32 %v2040, %v2042
      %v2044 = vrot.slane %v2030, %v2043
      %v2045 = vcombine.low %v2037, %v2044
      %v2046 = vcombine.low %v957, %v961
      %v2047 = vcombine.low %v965, %v969
      %v2048 = vcombine.low %v973, %v977
      %v2049 = vcombine.low %v981, %v985
      %v2051 = vunpack.c.l.s4 1966171168
      %v2052 = vunpack.c.0.s8 %v2051
      %v2053 = vlaneseq
      %v2054 = vshrl.u32 %v2053, 7
      %v2055 = vsub.s32 %v2052, %v2054
      %v2056 = vrot.slane %v2046, %v2055
      %v2058 = vunpack.c.l.s4 1966171168
      %v2059 = vunpack.c.0.s8 %v2058
      %v2060 = vlaneseq
      %v2061 = vshrl.u32 %v2060, 7
      %v2062 = vsub.s32 %v2059, %v2061
      %v2063 = vrot.slane %v2047, %v2062
      %v2065 = vunpack.c.l.s4 1966171168
      %v2066 = vunpack.c.0.s8 %v2065
      %v2067 = vlaneseq
      %v2068 = vshrl.u32 %v2067, 7
      %v2069 = vsub.s32 %v2066, %v2068
      %v2070 = vrot.slane %v2048, %v2069
      %v2072 = vunpack.c.l.s4 1966171168
      %v2073 = vunpack.c.0.s8 %v2072
      %v2074 = vlaneseq
      %v2075 = vshrl.u32 %v2074, 7
      %v2076 = vsub.s32 %v2073, %v2075
      %v2077 = vrot.slane %v2049, %v2076
      %v2078 = vcombine.low %v2056, %v2063
      %v2079 = vcombine.low %v2070, %v2077
      %v2081 = vunpack.c.l.s4 1966171168
      %v2082 = vunpack.c.0.s8 %v2081
      %v2083 = vlaneseq
      %v2084 = vshrl.u32 %v2083, 7
      %v2085 = vsub.s32 %v2082, %v2084
      %v2086 = vrot.slane %v2078, %v2085
      %v2088 = vunpack.c.l.s4 1966171168
      %v2089 = vunpack.c.0.s8 %v2088
      %v2090 = vlaneseq
      %v2091 = vshrl.u32 %v2090, 7
      %v2092 = vsub.s32 %v2089, %v2091
      %v2093 = vrot.slane %v2079, %v2092
      %v2094 = vcombine.low %v2086, %v2093
      %v2095 = vcombine.low %v989, %v993
      %v2096 = vcombine.low %v997, %v1001
      %v2097 = vcombine.low %v1005, %v1009
      %v2098 = vcombine.low %v1013, %v1017
      %v2100 = vunpack.c.l.s4 1966171168
      %v2101 = vunpack.c.0.s8 %v2100
      %v2102 = vlaneseq
      %v2103 = vshrl.u32 %v2102, 7
      %v2104 = vsub.s32 %v2101, %v2103
      %v2105 = vrot.slane %v2095, %v2104
      %v2107 = vunpack.c.l.s4 1966171168
      %v2108 = vunpack.c.0.s8 %v2107
      %v2109 = vlaneseq
      %v2110 = vshrl.u32 %v2109, 7
      %v2111 = vsub.s32 %v2108, %v2110
      %v2112 = vrot.slane %v2096, %v2111
      %v2114 = vunpack.c.l.s4 1966171168
      %v2115 = vunpack.c.0.s8 %v2114
      %v2116 = vlaneseq
      %v2117 = vshrl.u32 %v2116, 7
      %v2118 = vsub.s32 %v2115, %v2117
      %v2119 = vrot.slane %v2097, %v2118
      %v2121 = vunpack.c.l.s4 1966171168
      %v2122 = vunpack.c.0.s8 %v2121
      %v2123 = vlaneseq
      %v2124 = vshrl.u32 %v2123, 7
      %v2125 = vsub.s32 %v2122, %v2124
      %v2126 = vrot.slane %v2098, %v2125
      %v2127 = vcombine.low %v2105, %v2112
      %v2128 = vcombine.low %v2119, %v2126
      %v2130 = vunpack.c.l.s4 1966171168
      %v2131 = vunpack.c.0.s8 %v2130
      %v2132 = vlaneseq
      %v2133 = vshrl.u32 %v2132, 7
      %v2134 = vsub.s32 %v2131, %v2133
      %v2135 = vrot.slane %v2127, %v2134
      %v2137 = vunpack.c.l.s4 1966171168
      %v2138 = vunpack.c.0.s8 %v2137
      %v2139 = vlaneseq
      %v2140 = vshrl.u32 %v2139, 7
      %v2141 = vsub.s32 %v2138, %v2140
      %v2142 = vrot.slane %v2128, %v2141
      %v2143 = vcombine.low %v2135, %v2142
      %v2144 = vcombine.low %v1021, %v1025
      %v2145 = vcombine.low %v1029, %v1033
      %v2146 = vcombine.low %v1037, %v1041
      %v2147 = vcombine.low %v1045, %v1049
      %v2149 = vunpack.c.l.s4 1966171168
      %v2150 = vunpack.c.0.s8 %v2149
      %v2151 = vlaneseq
      %v2152 = vshrl.u32 %v2151, 7
      %v2153 = vsub.s32 %v2150, %v2152
      %v2154 = vrot.slane %v2144, %v2153
      %v2156 = vunpack.c.l.s4 1966171168
      %v2157 = vunpack.c.0.s8 %v2156
      %v2158 = vlaneseq
      %v2159 = vshrl.u32 %v2158, 7
      %v2160 = vsub.s32 %v2157, %v2159
      %v2161 = vrot.slane %v2145, %v2160
      %v2163 = vunpack.c.l.s4 1966171168
      %v2164 = vunpack.c.0.s8 %v2163
      %v2165 = vlaneseq
      %v2166 = vshrl.u32 %v2165, 7
      %v2167 = vsub.s32 %v2164, %v2166
      %v2168 = vrot.slane %v2146, %v2167
      %v2170 = vunpack.c.l.s4 1966171168
      %v2171 = vunpack.c.0.s8 %v2170
      %v2172 = vlaneseq
      %v2173 = vshrl.u32 %v2172, 7
      %v2174 = vsub.s32 %v2171, %v2173
      %v2175 = vrot.slane %v2147, %v2174
      %v2176 = vcombine.low %v2154, %v2161
      %v2177 = vcombine.low %v2168, %v2175
      %v2179 = vunpack.c.l.s4 1966171168
      %v2180 = vunpack.c.0.s8 %v2179
      %v2181 = vlaneseq
      %v2182 = vshrl.u32 %v2181, 7
      %v2183 = vsub.s32 %v2180, %v2182
      %v2184 = vrot.slane %v2176, %v2183
      %v2186 = vunpack.c.l.s4 1966171168
      %v2187 = vunpack.c.0.s8 %v2186
      %v2188 = vlaneseq
      %v2189 = vshrl.u32 %v2188, 7
      %v2190 = vsub.s32 %v2187, %v2189
      %v2191 = vrot.slane %v2177, %v2190
      %v2192 = vcombine.low %v2184, %v2191
      %v2193 = vcombine.low %v1053, %v1057
      %v2194 = vcombine.low %v1061, %v1065
      %v2195 = vcombine.low %v1069, %v1073
      %v2196 = vcombine.low %v1077, %v1081
      %v2198 = vunpack.c.l.s4 1966171168
      %v2199 = vunpack.c.0.s8 %v2198
      %v2200 = vlaneseq
      %v2201 = vshrl.u32 %v2200, 7
      %v2202 = vsub.s32 %v2199, %v2201
      %v2203 = vrot.slane %v2193, %v2202
      %v2205 = vunpack.c.l.s4 1966171168
      %v2206 = vunpack.c.0.s8 %v2205
      %v2207 = vlaneseq
      %v2208 = vshrl.u32 %v2207, 7
      %v2209 = vsub.s32 %v2206, %v2208
      %v2210 = vrot.slane %v2194, %v2209
      %v2212 = vunpack.c.l.s4 1966171168
      %v2213 = vunpack.c.0.s8 %v2212
      %v2214 = vlaneseq
      %v2215 = vshrl.u32 %v2214, 7
      %v2216 = vsub.s32 %v2213, %v2215
      %v2217 = vrot.slane %v2195, %v2216
      %v2219 = vunpack.c.l.s4 1966171168
      %v2220 = vunpack.c.0.s8 %v2219
      %v2221 = vlaneseq
      %v2222 = vshrl.u32 %v2221, 7
      %v2223 = vsub.s32 %v2220, %v2222
      %v2224 = vrot.slane %v2196, %v2223
      %v2225 = vcombine.low %v2203, %v2210
      %v2226 = vcombine.low %v2217, %v2224
      %v2228 = vunpack.c.l.s4 1966171168
      %v2229 = vunpack.c.0.s8 %v2228
      %v2230 = vlaneseq
      %v2231 = vshrl.u32 %v2230, 7
      %v2232 = vsub.s32 %v2229, %v2231
      %v2233 = vrot.slane %v2225, %v2232
      %v2235 = vunpack.c.l.s4 1966171168
      %v2236 = vunpack.c.0.s8 %v2235
      %v2237 = vlaneseq
      %v2238 = vshrl.u32 %v2237, 7
      %v2239 = vsub.s32 %v2236, %v2238
      %v2240 = vrot.slane %v2226, %v2239
      %v2241 = vcombine.low %v2233, %v2240
      %v2242 = vcombine.low %v1085, %v1089
      %v2243 = vcombine.low %v1093, %v1097
      %v2244 = vcombine.low %v1101, %v1105
      %v2245 = vcombine.low %v1109, %v1113
      %v2247 = vunpack.c.l.s4 1966171168
      %v2248 = vunpack.c.0.s8 %v2247
      %v2249 = vlaneseq
      %v2250 = vshrl.u32 %v2249, 7
      %v2251 = vsub.s32 %v2248, %v2250
      %v2252 = vrot.slane %v2242, %v2251
      %v2254 = vunpack.c.l.s4 1966171168
      %v2255 = vunpack.c.0.s8 %v2254
      %v2256 = vlaneseq
      %v2257 = vshrl.u32 %v2256, 7
      %v2258 = vsub.s32 %v2255, %v2257
      %v2259 = vrot.slane %v2243, %v2258
      %v2261 = vunpack.c.l.s4 1966171168
      %v2262 = vunpack.c.0.s8 %v2261
      %v2263 = vlaneseq
      %v2264 = vshrl.u32 %v2263, 7
      %v2265 = vsub.s32 %v2262, %v2264
      %v2266 = vrot.slane %v2244, %v2265
      %v2268 = vunpack.c.l.s4 1966171168
      %v2269 = vunpack.c.0.s8 %v2268
      %v2270 = vlaneseq
      %v2271 = vshrl.u32 %v2270, 7
      %v2272 = vsub.s32 %v2269, %v2271
      %v2273 = vrot.slane %v2245, %v2272
      %v2274 = vcombine.low %v2252, %v2259
      %v2275 = vcombine.low %v2266, %v2273
      %v2277 = vunpack.c.l.s4 1966171168
      %v2278 = vunpack.c.0.s8 %v2277
      %v2279 = vlaneseq
      %v2280 = vshrl.u32 %v2279, 7
      %v2281 = vsub.s32 %v2278, %v2280
      %v2282 = vrot.slane %v2274, %v2281
      %v2284 = vunpack.c.l.s4 1966171168
      %v2285 = vunpack.c.0.s8 %v2284
      %v2286 = vlaneseq
      %v2287 = vshrl.u32 %v2286, 7
      %v2288 = vsub.s32 %v2285, %v2287
      %v2289 = vrot.slane %v2275, %v2288
      %v2290 = vcombine.low %v2282, %v2289
      %v2291 = vcombine.low %v1117, %v1121
      %v2292 = vcombine.low %v1125, %v1129
      %v2293 = vcombine.low %v1133, %v1137
      %v2294 = vcombine.low %v1141, %v1145
      %v2296 = vunpack.c.l.s4 1966171168
      %v2297 = vunpack.c.0.s8 %v2296
      %v2298 = vlaneseq
      %v2299 = vshrl.u32 %v2298, 7
      %v2300 = vsub.s32 %v2297, %v2299
      %v2301 = vrot.slane %v2291, %v2300
      %v2303 = vunpack.c.l.s4 1966171168
      %v2304 = vunpack.c.0.s8 %v2303
      %v2305 = vlaneseq
      %v2306 = vshrl.u32 %v2305, 7
      %v2307 = vsub.s32 %v2304, %v2306
      %v2308 = vrot.slane %v2292, %v2307
      %v2310 = vunpack.c.l.s4 1966171168
      %v2311 = vunpack.c.0.s8 %v2310
      %v2312 = vlaneseq
      %v2313 = vshrl.u32 %v2312, 7
      %v2314 = vsub.s32 %v2311, %v2313
      %v2315 = vrot.slane %v2293, %v2314
      %v2317 = vunpack.c.l.s4 1966171168
      %v2318 = vunpack.c.0.s8 %v2317
      %v2319 = vlaneseq
      %v2320 = vshrl.u32 %v2319, 7
      %v2321 = vsub.s32 %v2318, %v2320
      %v2322 = vrot.slane %v2294, %v2321
      %v2323 = vcombine.low %v2301, %v2308
      %v2324 = vcombine.low %v2315, %v2322
      %v2326 = vunpack.c.l.s4 1966171168
      %v2327 = vunpack.c.0.s8 %v2326
      %v2328 = vlaneseq
      %v2329 = vshrl.u32 %v2328, 7
      %v2330 = vsub.s32 %v2327, %v2329
      %v2331 = vrot.slane %v2323, %v2330
      %v2333 = vunpack.c.l.s4 1966171168
      %v2334 = vunpack.c.0.s8 %v2333
      %v2335 = vlaneseq
      %v2336 = vshrl.u32 %v2335, 7
      %v2337 = vsub.s32 %v2334, %v2336
      %v2338 = vrot.slane %v2324, %v2337
      %v2339 = vcombine.low %v2331, %v2338
      %v2340 = vcombine.low %v1149, %v1153
      %v2341 = vcombine.low %v1157, %v1161
      %v2342 = vcombine.low %v1165, %v1169
      %v2343 = vcombine.low %v1173, %v1177
      %v2345 = vunpack.c.l.s4 1966171168
      %v2346 = vunpack.c.0.s8 %v2345
      %v2347 = vlaneseq
      %v2348 = vshrl.u32 %v2347, 7
      %v2349 = vsub.s32 %v2346, %v2348
      %v2350 = vrot.slane %v2340, %v2349
      %v2352 = vunpack.c.l.s4 1966171168
      %v2353 = vunpack.c.0.s8 %v2352
      %v2354 = vlaneseq
      %v2355 = vshrl.u32 %v2354, 7
      %v2356 = vsub.s32 %v2353, %v2355
      %v2357 = vrot.slane %v2341, %v2356
      %v2359 = vunpack.c.l.s4 1966171168
      %v2360 = vunpack.c.0.s8 %v2359
      %v2361 = vlaneseq
      %v2362 = vshrl.u32 %v2361, 7
      %v2363 = vsub.s32 %v2360, %v2362
      %v2364 = vrot.slane %v2342, %v2363
      %v2366 = vunpack.c.l.s4 1966171168
      %v2367 = vunpack.c.0.s8 %v2366
      %v2368 = vlaneseq
      %v2369 = vshrl.u32 %v2368, 7
      %v2370 = vsub.s32 %v2367, %v2369
      %v2371 = vrot.slane %v2343, %v2370
      %v2372 = vcombine.low %v2350, %v2357
      %v2373 = vcombine.low %v2364, %v2371
      %v2375 = vunpack.c.l.s4 1966171168
      %v2376 = vunpack.c.0.s8 %v2375
      %v2377 = vlaneseq
      %v2378 = vshrl.u32 %v2377, 7
      %v2379 = vsub.s32 %v2376, %v2378
      %v2380 = vrot.slane %v2372, %v2379
      %v2382 = vunpack.c.l.s4 1966171168
      %v2383 = vunpack.c.0.s8 %v2382
      %v2384 = vlaneseq
      %v2385 = vshrl.u32 %v2384, 7
      %v2386 = vsub.s32 %v2383, %v2385
      %v2387 = vrot.slane %v2373, %v2386
      %v2388 = vcombine.low %v2380, %v2387
      %v2389 = vcombine.low %v1181, %v1185
      %v2390 = vcombine.low %v1189, %v1193
      %v2391 = vcombine.low %v1197, %v1201
      %v2392 = vcombine.low %v1205, %v1209
      %v2394 = vunpack.c.l.s4 1966171168
      %v2395 = vunpack.c.0.s8 %v2394
      %v2396 = vlaneseq
      %v2397 = vshrl.u32 %v2396, 7
      %v2398 = vsub.s32 %v2395, %v2397
      %v2399 = vrot.slane %v2389, %v2398
      %v2401 = vunpack.c.l.s4 1966171168
      %v2402 = vunpack.c.0.s8 %v2401
      %v2403 = vlaneseq
      %v2404 = vshrl.u32 %v2403, 7
      %v2405 = vsub.s32 %v2402, %v2404
      %v2406 = vrot.slane %v2390, %v2405
      %v2408 = vunpack.c.l.s4 1966171168
      %v2409 = vunpack.c.0.s8 %v2408
      %v2410 = vlaneseq
      %v2411 = vshrl.u32 %v2410, 7
      %v2412 = vsub.s32 %v2409, %v2411
      %v2413 = vrot.slane %v2391, %v2412
      %v2415 = vunpack.c.l.s4 1966171168
      %v2416 = vunpack.c.0.s8 %v2415
      %v2417 = vlaneseq
      %v2418 = vshrl.u32 %v2417, 7
      %v2419 = vsub.s32 %v2416, %v2418
      %v2420 = vrot.slane %v2392, %v2419
      %v2421 = vcombine.low %v2399, %v2406
      %v2422 = vcombine.low %v2413, %v2420
      %v2424 = vunpack.c.l.s4 1966171168
      %v2425 = vunpack.c.0.s8 %v2424
      %v2426 = vlaneseq
      %v2427 = vshrl.u32 %v2426, 7
      %v2428 = vsub.s32 %v2425, %v2427
      %v2429 = vrot.slane %v2421, %v2428
      %v2431 = vunpack.c.l.s4 1966171168
      %v2432 = vunpack.c.0.s8 %v2431
      %v2433 = vlaneseq
      %v2434 = vshrl.u32 %v2433, 7
      %v2435 = vsub.s32 %v2432, %v2434
      %v2436 = vrot.slane %v2422, %v2435
      %v2437 = vcombine.low %v2429, %v2436
      %v2438 = vcombine.low %v1213, %v1217
      %v2439 = vcombine.low %v1221, %v1225
      %v2440 = vcombine.low %v1229, %v1233
      %v2441 = vcombine.low %v1237, %v1241
      %v2443 = vunpack.c.l.s4 1966171168
      %v2444 = vunpack.c.0.s8 %v2443
      %v2445 = vlaneseq
      %v2446 = vshrl.u32 %v2445, 7
      %v2447 = vsub.s32 %v2444, %v2446
      %v2448 = vrot.slane %v2438, %v2447
      %v2450 = vunpack.c.l.s4 1966171168
      %v2451 = vunpack.c.0.s8 %v2450
      %v2452 = vlaneseq
      %v2453 = vshrl.u32 %v2452, 7
      %v2454 = vsub.s32 %v2451, %v2453
      %v2455 = vrot.slane %v2439, %v2454
      %v2457 = vunpack.c.l.s4 1966171168
      %v2458 = vunpack.c.0.s8 %v2457
      %v2459 = vlaneseq
      %v2460 = vshrl.u32 %v2459, 7
      %v2461 = vsub.s32 %v2458, %v2460
      %v2462 = vrot.slane %v2440, %v2461
      %v2464 = vunpack.c.l.s4 1966171168
      %v2465 = vunpack.c.0.s8 %v2464
      %v2466 = vlaneseq
      %v2467 = vshrl.u32 %v2466, 7
      %v2468 = vsub.s32 %v2465, %v2467
      %v2469 = vrot.slane %v2441, %v2468
      %v2470 = vcombine.low %v2448, %v2455
      %v2471 = vcombine.low %v2462, %v2469
      %v2473 = vunpack.c.l.s4 1966171168
      %v2474 = vunpack.c.0.s8 %v2473
      %v2475 = vlaneseq
      %v2476 = vshrl.u32 %v2475, 7
      %v2477 = vsub.s32 %v2474, %v2476
      %v2478 = vrot.slane %v2470, %v2477
      %v2480 = vunpack.c.l.s4 1966171168
      %v2481 = vunpack.c.0.s8 %v2480
      %v2482 = vlaneseq
      %v2483 = vshrl.u32 %v2482, 7
      %v2484 = vsub.s32 %v2481, %v2483
      %v2485 = vrot.slane %v2471, %v2484
      %v2486 = vcombine.low %v2478, %v2485
      %v2487 = vcombine.low %v1245, %v1249
      %v2488 = vcombine.low %v1253, %v1257
      %v2489 = vcombine.low %v1261, %v1265
      %v2490 = vcombine.low %v1269, %v1273
      %v2492 = vunpack.c.l.s4 1966171168
      %v2493 = vunpack.c.0.s8 %v2492
      %v2494 = vlaneseq
      %v2495 = vshrl.u32 %v2494, 7
      %v2496 = vsub.s32 %v2493, %v2495
      %v2497 = vrot.slane %v2487, %v2496
      %v2499 = vunpack.c.l.s4 1966171168
      %v2500 = vunpack.c.0.s8 %v2499
      %v2501 = vlaneseq
      %v2502 = vshrl.u32 %v2501, 7
      %v2503 = vsub.s32 %v2500, %v2502
      %v2504 = vrot.slane %v2488, %v2503
      %v2506 = vunpack.c.l.s4 1966171168
      %v2507 = vunpack.c.0.s8 %v2506
      %v2508 = vlaneseq
      %v2509 = vshrl.u32 %v2508, 7
      %v2510 = vsub.s32 %v2507, %v2509
      %v2511 = vrot.slane %v2489, %v2510
      %v2513 = vunpack.c.l.s4 1966171168
      %v2514 = vunpack.c.0.s8 %v2513
      %v2515 = vlaneseq
      %v2516 = vshrl.u32 %v2515, 7
      %v2517 = vsub.s32 %v2514, %v2516
      %v2518 = vrot.slane %v2490, %v2517
      %v2519 = vcombine.low %v2497, %v2504
      %v2520 = vcombine.low %v2511, %v2518
      %v2522 = vunpack.c.l.s4 1966171168
      %v2523 = vunpack.c.0.s8 %v2522
      %v2524 = vlaneseq
      %v2525 = vshrl.u32 %v2524, 7
      %v2526 = vsub.s32 %v2523, %v2525
      %v2527 = vrot.slane %v2519, %v2526
      %v2529 = vunpack.c.l.s4 1966171168
      %v2530 = vunpack.c.0.s8 %v2529
      %v2531 = vlaneseq
      %v2532 = vshrl.u32 %v2531, 7
      %v2533 = vsub.s32 %v2530, %v2532
      %v2534 = vrot.slane %v2520, %v2533
      %v2535 = vcombine.low %v2527, %v2534
      %v2536 = vcombine.low %v1277, %v1281
      %v2537 = vcombine.low %v1285, %v1289
      %v2538 = vcombine.low %v1293, %v1297
      %v2539 = vcombine.low %v1301, %v1305
      %v2541 = vunpack.c.l.s4 1966171168
      %v2542 = vunpack.c.0.s8 %v2541
      %v2543 = vlaneseq
      %v2544 = vshrl.u32 %v2543, 7
      %v2545 = vsub.s32 %v2542, %v2544
      %v2546 = vrot.slane %v2536, %v2545
      %v2548 = vunpack.c.l.s4 1966171168
      %v2549 = vunpack.c.0.s8 %v2548
      %v2550 = vlaneseq
      %v2551 = vshrl.u32 %v2550, 7
      %v2552 = vsub.s32 %v2549, %v2551
      %v2553 = vrot.slane %v2537, %v2552
      %v2555 = vunpack.c.l.s4 1966171168
      %v2556 = vunpack.c.0.s8 %v2555
      %v2557 = vlaneseq
      %v2558 = vshrl.u32 %v2557, 7
      %v2559 = vsub.s32 %v2556, %v2558
      %v2560 = vrot.slane %v2538, %v2559
      %v2562 = vunpack.c.l.s4 1966171168
      %v2563 = vunpack.c.0.s8 %v2562
      %v2564 = vlaneseq
      %v2565 = vshrl.u32 %v2564, 7
      %v2566 = vsub.s32 %v2563, %v2565
      %v2567 = vrot.slane %v2539, %v2566
      %v2568 = vcombine.low %v2546, %v2553
      %v2569 = vcombine.low %v2560, %v2567
      %v2571 = vunpack.c.l.s4 1966171168
      %v2572 = vunpack.c.0.s8 %v2571
      %v2573 = vlaneseq
      %v2574 = vshrl.u32 %v2573, 7
      %v2575 = vsub.s32 %v2572, %v2574
      %v2576 = vrot.slane %v2568, %v2575
      %v2578 = vunpack.c.l.s4 1966171168
      %v2579 = vunpack.c.0.s8 %v2578
      %v2580 = vlaneseq
      %v2581 = vshrl.u32 %v2580, 7
      %v2582 = vsub.s32 %v2579, %v2581
      %v2583 = vrot.slane %v2569, %v2582
      %v2584 = vcombine.low %v2576, %v2583
      %v2585 = vcombine.low %v1309, %v1313
      %v2586 = vcombine.low %v1317, %v1321
      %v2587 = vcombine.low %v1325, %v1329
      %v2588 = vcombine.low %v1333, %v1337
      %v2590 = vunpack.c.l.s4 1966171168
      %v2591 = vunpack.c.0.s8 %v2590
      %v2592 = vlaneseq
      %v2593 = vshrl.u32 %v2592, 7
      %v2594 = vsub.s32 %v2591, %v2593
      %v2595 = vrot.slane %v2585, %v2594
      %v2597 = vunpack.c.l.s4 1966171168
      %v2598 = vunpack.c.0.s8 %v2597
      %v2599 = vlaneseq
      %v2600 = vshrl.u32 %v2599, 7
      %v2601 = vsub.s32 %v2598, %v2600
      %v2602 = vrot.slane %v2586, %v2601
      %v2604 = vunpack.c.l.s4 1966171168
      %v2605 = vunpack.c.0.s8 %v2604
      %v2606 = vlaneseq
      %v2607 = vshrl.u32 %v2606, 7
      %v2608 = vsub.s32 %v2605, %v2607
      %v2609 = vrot.slane %v2587, %v2608
      %v2611 = vunpack.c.l.s4 1966171168
      %v2612 = vunpack.c.0.s8 %v2611
      %v2613 = vlaneseq
      %v2614 = vshrl.u32 %v2613, 7
      %v2615 = vsub.s32 %v2612, %v2614
      %v2616 = vrot.slane %v2588, %v2615
      %v2617 = vcombine.low %v2595, %v2602
      %v2618 = vcombine.low %v2609, %v2616
      %v2620 = vunpack.c.l.s4 1966171168
      %v2621 = vunpack.c.0.s8 %v2620
      %v2622 = vlaneseq
      %v2623 = vshrl.u32 %v2622, 7
      %v2624 = vsub.s32 %v2621, %v2623
      %v2625 = vrot.slane %v2617, %v2624
      %v2627 = vunpack.c.l.s4 1966171168
      %v2628 = vunpack.c.0.s8 %v2627
      %v2629 = vlaneseq
      %v2630 = vshrl.u32 %v2629, 7
      %v2631 = vsub.s32 %v2628, %v2630
      %v2632 = vrot.slane %v2618, %v2631
      %v2633 = vcombine.low %v2625, %v2632
      %v2634 = vcombine.low %v1341, %v1345
      %v2635 = vcombine.low %v1349, %v1353
      %v2636 = vcombine.low %v1357, %v1361
      %v2637 = vcombine.low %v1365, %v1369
      %v2639 = vunpack.c.l.s4 1966171168
      %v2640 = vunpack.c.0.s8 %v2639
      %v2641 = vlaneseq
      %v2642 = vshrl.u32 %v2641, 7
      %v2643 = vsub.s32 %v2640, %v2642
      %v2644 = vrot.slane %v2634, %v2643
      %v2646 = vunpack.c.l.s4 1966171168
      %v2647 = vunpack.c.0.s8 %v2646
      %v2648 = vlaneseq
      %v2649 = vshrl.u32 %v2648, 7
      %v2650 = vsub.s32 %v2647, %v2649
      %v2651 = vrot.slane %v2635, %v2650
      %v2653 = vunpack.c.l.s4 1966171168
      %v2654 = vunpack.c.0.s8 %v2653
      %v2655 = vlaneseq
      %v2656 = vshrl.u32 %v2655, 7
      %v2657 = vsub.s32 %v2654, %v2656
      %v2658 = vrot.slane %v2636, %v2657
      %v2660 = vunpack.c.l.s4 1966171168
      %v2661 = vunpack.c.0.s8 %v2660
      %v2662 = vlaneseq
      %v2663 = vshrl.u32 %v2662, 7
      %v2664 = vsub.s32 %v2661, %v2663
      %v2665 = vrot.slane %v2637, %v2664
      %v2666 = vcombine.low %v2644, %v2651
      %v2667 = vcombine.low %v2658, %v2665
      %v2669 = vunpack.c.l.s4 1966171168
      %v2670 = vunpack.c.0.s8 %v2669
      %v2671 = vlaneseq
      %v2672 = vshrl.u32 %v2671, 7
      %v2673 = vsub.s32 %v2670, %v2672
      %v2674 = vrot.slane %v2666, %v2673
      %v2676 = vunpack.c.l.s4 1966171168
      %v2677 = vunpack.c.0.s8 %v2676
      %v2678 = vlaneseq
      %v2679 = vshrl.u32 %v2678, 7
      %v2680 = vsub.s32 %v2677, %v2679
      %v2681 = vrot.slane %v2667, %v2680
      %v2682 = vcombine.low %v2674, %v2681
      %v2683 = vcombine.low %v1373, %v1377
      %v2684 = vcombine.low %v1381, %v1385
      %v2685 = vcombine.low %v1389, %v1393
      %v2686 = vcombine.low %v1397, %v1401
      %v2688 = vunpack.c.l.s4 1966171168
      %v2689 = vunpack.c.0.s8 %v2688
      %v2690 = vlaneseq
      %v2691 = vshrl.u32 %v2690, 7
      %v2692 = vsub.s32 %v2689, %v2691
      %v2693 = vrot.slane %v2683, %v2692
      %v2695 = vunpack.c.l.s4 1966171168
      %v2696 = vunpack.c.0.s8 %v2695
      %v2697 = vlaneseq
      %v2698 = vshrl.u32 %v2697, 7
      %v2699 = vsub.s32 %v2696, %v2698
      %v2700 = vrot.slane %v2684, %v2699
      %v2702 = vunpack.c.l.s4 1966171168
      %v2703 = vunpack.c.0.s8 %v2702
      %v2704 = vlaneseq
      %v2705 = vshrl.u32 %v2704, 7
      %v2706 = vsub.s32 %v2703, %v2705
      %v2707 = vrot.slane %v2685, %v2706
      %v2709 = vunpack.c.l.s4 1966171168
      %v2710 = vunpack.c.0.s8 %v2709
      %v2711 = vlaneseq
      %v2712 = vshrl.u32 %v2711, 7
      %v2713 = vsub.s32 %v2710, %v2712
      %v2714 = vrot.slane %v2686, %v2713
      %v2715 = vcombine.low %v2693, %v2700
      %v2716 = vcombine.low %v2707, %v2714
      %v2718 = vunpack.c.l.s4 1966171168
      %v2719 = vunpack.c.0.s8 %v2718
      %v2720 = vlaneseq
      %v2721 = vshrl.u32 %v2720, 7
      %v2722 = vsub.s32 %v2719, %v2721
      %v2723 = vrot.slane %v2715, %v2722
      %v2725 = vunpack.c.l.s4 1966171168
      %v2726 = vunpack.c.0.s8 %v2725
      %v2727 = vlaneseq
      %v2728 = vshrl.u32 %v2727, 7
      %v2729 = vsub.s32 %v2726, %v2728
      %v2730 = vrot.slane %v2716, %v2729
      %v2731 = vcombine.low %v2723, %v2730
      %v2732 = vcombine.low %v1405, %v1409
      %v2733 = vcombine.low %v1413, %v1417
      %v2734 = vcombine.low %v1421, %v1425
      %v2735 = vcombine.low %v1429, %v1433
      %v2737 = vunpack.c.l.s4 1966171168
      %v2738 = vunpack.c.0.s8 %v2737
      %v2739 = vlaneseq
      %v2740 = vshrl.u32 %v2739, 7
      %v2741 = vsub.s32 %v2738, %v2740
      %v2742 = vrot.slane %v2732, %v2741
      %v2744 = vunpack.c.l.s4 1966171168
      %v2745 = vunpack.c.0.s8 %v2744
      %v2746 = vlaneseq
      %v2747 = vshrl.u32 %v2746, 7
      %v2748 = vsub.s32 %v2745, %v2747
      %v2749 = vrot.slane %v2733, %v2748
      %v2751 = vunpack.c.l.s4 1966171168
      %v2752 = vunpack.c.0.s8 %v2751
      %v2753 = vlaneseq
      %v2754 = vshrl.u32 %v2753, 7
      %v2755 = vsub.s32 %v2752, %v2754
      %v2756 = vrot.slane %v2734, %v2755
      %v2758 = vunpack.c.l.s4 1966171168
      %v2759 = vunpack.c.0.s8 %v2758
      %v2760 = vlaneseq
      %v2761 = vshrl.u32 %v2760, 7
      %v2762 = vsub.s32 %v2759, %v2761
      %v2763 = vrot.slane %v2735, %v2762
      %v2764 = vcombine.low %v2742, %v2749
      %v2765 = vcombine.low %v2756, %v2763
      %v2767 = vunpack.c.l.s4 1966171168
      %v2768 = vunpack.c.0.s8 %v2767
      %v2769 = vlaneseq
      %v2770 = vshrl.u32 %v2769, 7
      %v2771 = vsub.s32 %v2768, %v2770
      %v2772 = vrot.slane %v2764, %v2771
      %v2774 = vunpack.c.l.s4 1966171168
      %v2775 = vunpack.c.0.s8 %v2774
      %v2776 = vlaneseq
      %v2777 = vshrl.u32 %v2776, 7
      %v2778 = vsub.s32 %v2775, %v2777
      %v2779 = vrot.slane %v2765, %v2778
      %v2780 = vcombine.low %v2772, %v2779
      %v2781 = vcombine.low %v1437, %v1441
      %v2782 = vcombine.low %v1445, %v1449
      %v2783 = vcombine.low %v1453, %v1457
      %v2784 = vcombine.low %v1461, %v1465
      %v2786 = vunpack.c.l.s4 1966171168
      %v2787 = vunpack.c.0.s8 %v2786
      %v2788 = vlaneseq
      %v2789 = vshrl.u32 %v2788, 7
      %v2790 = vsub.s32 %v2787, %v2789
      %v2791 = vrot.slane %v2781, %v2790
      %v2793 = vunpack.c.l.s4 1966171168
      %v2794 = vunpack.c.0.s8 %v2793
      %v2795 = vlaneseq
      %v2796 = vshrl.u32 %v2795, 7
      %v2797 = vsub.s32 %v2794, %v2796
      %v2798 = vrot.slane %v2782, %v2797
      %v2800 = vunpack.c.l.s4 1966171168
      %v2801 = vunpack.c.0.s8 %v2800
      %v2802 = vlaneseq
      %v2803 = vshrl.u32 %v2802, 7
      %v2804 = vsub.s32 %v2801, %v2803
      %v2805 = vrot.slane %v2783, %v2804
      %v2807 = vunpack.c.l.s4 1966171168
      %v2808 = vunpack.c.0.s8 %v2807
      %v2809 = vlaneseq
      %v2810 = vshrl.u32 %v2809, 7
      %v2811 = vsub.s32 %v2808, %v2810
      %v2812 = vrot.slane %v2784, %v2811
      %v2813 = vcombine.low %v2791, %v2798
      %v2814 = vcombine.low %v2805, %v2812
      %v2816 = vunpack.c.l.s4 1966171168
      %v2817 = vunpack.c.0.s8 %v2816
      %v2818 = vlaneseq
      %v2819 = vshrl.u32 %v2818, 7
      %v2820 = vsub.s32 %v2817, %v2819
      %v2821 = vrot.slane %v2813, %v2820
      %v2823 = vunpack.c.l.s4 1966171168
      %v2824 = vunpack.c.0.s8 %v2823
      %v2825 = vlaneseq
      %v2826 = vshrl.u32 %v2825, 7
      %v2827 = vsub.s32 %v2824, %v2826
      %v2828 = vrot.slane %v2814, %v2827
      %v2829 = vcombine.low %v2821, %v2828
      %v2830 = vcombine.low %v1469, %v1473
      %v2831 = vcombine.low %v1477, %v1481
      %v2832 = vcombine.low %v1485, %v1489
      %v2833 = vcombine.low %v1493, %v1497
      %v2835 = vunpack.c.l.s4 1966171168
      %v2836 = vunpack.c.0.s8 %v2835
      %v2837 = vlaneseq
      %v2838 = vshrl.u32 %v2837, 7
      %v2839 = vsub.s32 %v2836, %v2838
      %v2840 = vrot.slane %v2830, %v2839
      %v2842 = vunpack.c.l.s4 1966171168
      %v2843 = vunpack.c.0.s8 %v2842
      %v2844 = vlaneseq
      %v2845 = vshrl.u32 %v2844, 7
      %v2846 = vsub.s32 %v2843, %v2845
      %v2847 = vrot.slane %v2831, %v2846
      %v2849 = vunpack.c.l.s4 1966171168
      %v2850 = vunpack.c.0.s8 %v2849
      %v2851 = vlaneseq
      %v2852 = vshrl.u32 %v2851, 7
      %v2853 = vsub.s32 %v2850, %v2852
      %v2854 = vrot.slane %v2832, %v2853
      %v2856 = vunpack.c.l.s4 1966171168
      %v2857 = vunpack.c.0.s8 %v2856
      %v2858 = vlaneseq
      %v2859 = vshrl.u32 %v2858, 7
      %v2860 = vsub.s32 %v2857, %v2859
      %v2861 = vrot.slane %v2833, %v2860
      %v2862 = vcombine.low %v2840, %v2847
      %v2863 = vcombine.low %v2854, %v2861
      %v2865 = vunpack.c.l.s4 1966171168
      %v2866 = vunpack.c.0.s8 %v2865
      %v2867 = vlaneseq
      %v2868 = vshrl.u32 %v2867, 7
      %v2869 = vsub.s32 %v2866, %v2868
      %v2870 = vrot.slane %v2862, %v2869
      %v2872 = vunpack.c.l.s4 1966171168
      %v2873 = vunpack.c.0.s8 %v2872
      %v2874 = vlaneseq
      %v2875 = vshrl.u32 %v2874, 7
      %v2876 = vsub.s32 %v2873, %v2875
      %v2877 = vrot.slane %v2863, %v2876
      %v2878 = vcombine.low %v2870, %v2877
      %v2879 = vcombine.low %v1501, %v1505
      %v2880 = vcombine.low %v1509, %v1513
      %v2881 = vcombine.low %v1517, %v1521
      %v2882 = vcombine.low %v1525, %v1529
      %v2884 = vunpack.c.l.s4 1966171168
      %v2885 = vunpack.c.0.s8 %v2884
      %v2886 = vlaneseq
      %v2887 = vshrl.u32 %v2886, 7
      %v2888 = vsub.s32 %v2885, %v2887
      %v2889 = vrot.slane %v2879, %v2888
      %v2891 = vunpack.c.l.s4 1966171168
      %v2892 = vunpack.c.0.s8 %v2891
      %v2893 = vlaneseq
      %v2894 = vshrl.u32 %v2893, 7
      %v2895 = vsub.s32 %v2892, %v2894
      %v2896 = vrot.slane %v2880, %v2895
      %v2898 = vunpack.c.l.s4 1966171168
      %v2899 = vunpack.c.0.s8 %v2898
      %v2900 = vlaneseq
      %v2901 = vshrl.u32 %v2900, 7
      %v2902 = vsub.s32 %v2899, %v2901
      %v2903 = vrot.slane %v2881, %v2902
      %v2905 = vunpack.c.l.s4 1966171168
      %v2906 = vunpack.c.0.s8 %v2905
      %v2907 = vlaneseq
      %v2908 = vshrl.u32 %v2907, 7
      %v2909 = vsub.s32 %v2906, %v2908
      %v2910 = vrot.slane %v2882, %v2909
      %v2911 = vcombine.low %v2889, %v2896
      %v2912 = vcombine.low %v2903, %v2910
      %v2914 = vunpack.c.l.s4 1966171168
      %v2915 = vunpack.c.0.s8 %v2914
      %v2916 = vlaneseq
      %v2917 = vshrl.u32 %v2916, 7
      %v2918 = vsub.s32 %v2915, %v2917
      %v2919 = vrot.slane %v2911, %v2918
      %v2921 = vunpack.c.l.s4 1966171168
      %v2922 = vunpack.c.0.s8 %v2921
      %v2923 = vlaneseq
      %v2924 = vshrl.u32 %v2923, 7
      %v2925 = vsub.s32 %v2922, %v2924
      %v2926 = vrot.slane %v2912, %v2925
      %v2927 = vcombine.low %v2919, %v2926
      %v2928 = vcombine.low %v1533, %v1537
      %v2929 = vcombine.low %v1541, %v1545
      %v2930 = vcombine.low %v1549, %v1553
      %v2931 = vcombine.low %v1557, %v1561
      %v2933 = vunpack.c.l.s4 1966171168
      %v2934 = vunpack.c.0.s8 %v2933
      %v2935 = vlaneseq
      %v2936 = vshrl.u32 %v2935, 7
      %v2937 = vsub.s32 %v2934, %v2936
      %v2938 = vrot.slane %v2928, %v2937
      %v2940 = vunpack.c.l.s4 1966171168
      %v2941 = vunpack.c.0.s8 %v2940
      %v2942 = vlaneseq
      %v2943 = vshrl.u32 %v2942, 7
      %v2944 = vsub.s32 %v2941, %v2943
      %v2945 = vrot.slane %v2929, %v2944
      %v2947 = vunpack.c.l.s4 1966171168
      %v2948 = vunpack.c.0.s8 %v2947
      %v2949 = vlaneseq
      %v2950 = vshrl.u32 %v2949, 7
      %v2951 = vsub.s32 %v2948, %v2950
      %v2952 = vrot.slane %v2930, %v2951
      %v2954 = vunpack.c.l.s4 1966171168
      %v2955 = vunpack.c.0.s8 %v2954
      %v2956 = vlaneseq
      %v2957 = vshrl.u32 %v2956, 7
      %v2958 = vsub.s32 %v2955, %v2957
      %v2959 = vrot.slane %v2931, %v2958
      %v2960 = vcombine.low %v2938, %v2945
      %v2961 = vcombine.low %v2952, %v2959
      %v2963 = vunpack.c.l.s4 1966171168
      %v2964 = vunpack.c.0.s8 %v2963
      %v2965 = vlaneseq
      %v2966 = vshrl.u32 %v2965, 7
      %v2967 = vsub.s32 %v2964, %v2966
      %v2968 = vrot.slane %v2960, %v2967
      %v2970 = vunpack.c.l.s4 1966171168
      %v2971 = vunpack.c.0.s8 %v2970
      %v2972 = vlaneseq
      %v2973 = vshrl.u32 %v2972, 7
      %v2974 = vsub.s32 %v2971, %v2973
      %v2975 = vrot.slane %v2961, %v2974
      %v2976 = vcombine.low %v2968, %v2975
      %v2977 = vcombine.low %v1565, %v1569
      %v2978 = vcombine.low %v1573, %v1577
      %v2979 = vcombine.low %v1581, %v1585
      %v2980 = vcombine.low %v1589, %v1593
      %v2982 = vunpack.c.l.s4 1966171168
      %v2983 = vunpack.c.0.s8 %v2982
      %v2984 = vlaneseq
      %v2985 = vshrl.u32 %v2984, 7
      %v2986 = vsub.s32 %v2983, %v2985
      %v2987 = vrot.slane %v2977, %v2986
      %v2989 = vunpack.c.l.s4 1966171168
      %v2990 = vunpack.c.0.s8 %v2989
      %v2991 = vlaneseq
      %v2992 = vshrl.u32 %v2991, 7
      %v2993 = vsub.s32 %v2990, %v2992
      %v2994 = vrot.slane %v2978, %v2993
      %v2996 = vunpack.c.l.s4 1966171168
      %v2997 = vunpack.c.0.s8 %v2996
      %v2998 = vlaneseq
      %v2999 = vshrl.u32 %v2998, 7
      %v3000 = vsub.s32 %v2997, %v2999
      %v3001 = vrot.slane %v2979, %v3000
      %v3003 = vunpack.c.l.s4 1966171168
      %v3004 = vunpack.c.0.s8 %v3003
      %v3005 = vlaneseq
      %v3006 = vshrl.u32 %v3005, 7
      %v3007 = vsub.s32 %v3004, %v3006
      %v3008 = vrot.slane %v2980, %v3007
      %v3009 = vcombine.low %v2987, %v2994
      %v3010 = vcombine.low %v3001, %v3008
      %v3012 = vunpack.c.l.s4 1966171168
      %v3013 = vunpack.c.0.s8 %v3012
      %v3014 = vlaneseq
      %v3015 = vshrl.u32 %v3014, 7
      %v3016 = vsub.s32 %v3013, %v3015
      %v3017 = vrot.slane %v3009, %v3016
      %v3019 = vunpack.c.l.s4 1966171168
      %v3020 = vunpack.c.0.s8 %v3019
      %v3021 = vlaneseq
      %v3022 = vshrl.u32 %v3021, 7
      %v3023 = vsub.s32 %v3020, %v3022
      %v3024 = vrot.slane %v3010, %v3023
      %v3025 = vcombine.low %v3017, %v3024
      %v3026 = vcombine.low %v1597, %v1601
      %v3027 = vcombine.low %v1605, %v1609
      %v3028 = vcombine.low %v1613, %v1617
      %v3029 = vcombine.low %v1621, %v1625
      %v3031 = vunpack.c.l.s4 1966171168
      %v3032 = vunpack.c.0.s8 %v3031
      %v3033 = vlaneseq
      %v3034 = vshrl.u32 %v3033, 7
      %v3035 = vsub.s32 %v3032, %v3034
      %v3036 = vrot.slane %v3026, %v3035
      %v3038 = vunpack.c.l.s4 1966171168
      %v3039 = vunpack.c.0.s8 %v3038
      %v3040 = vlaneseq
      %v3041 = vshrl.u32 %v3040, 7
      %v3042 = vsub.s32 %v3039, %v3041
      %v3043 = vrot.slane %v3027, %v3042
      %v3045 = vunpack.c.l.s4 1966171168
      %v3046 = vunpack.c.0.s8 %v3045
      %v3047 = vlaneseq
      %v3048 = vshrl.u32 %v3047, 7
      %v3049 = vsub.s32 %v3046, %v3048
      %v3050 = vrot.slane %v3028, %v3049
      %v3052 = vunpack.c.l.s4 1966171168
      %v3053 = vunpack.c.0.s8 %v3052
      %v3054 = vlaneseq
      %v3055 = vshrl.u32 %v3054, 7
      %v3056 = vsub.s32 %v3053, %v3055
      %v3057 = vrot.slane %v3029, %v3056
      %v3058 = vcombine.low %v3036, %v3043
      %v3059 = vcombine.low %v3050, %v3057
      %v3061 = vunpack.c.l.s4 1966171168
      %v3062 = vunpack.c.0.s8 %v3061
      %v3063 = vlaneseq
      %v3064 = vshrl.u32 %v3063, 7
      %v3065 = vsub.s32 %v3062, %v3064
      %v3066 = vrot.slane %v3058, %v3065
      %v3068 = vunpack.c.l.s4 1966171168
      %v3069 = vunpack.c.0.s8 %v3068
      %v3070 = vlaneseq
      %v3071 = vshrl.u32 %v3070, 7
      %v3072 = vsub.s32 %v3069, %v3071
      %v3073 = vrot.slane %v3059, %v3072
      %v3074 = vcombine.low %v3066, %v3073
      %v3075 = vcombine.low %v1629, %v1633
      %v3076 = vcombine.low %v1637, %v1641
      %v3077 = vcombine.low %v1645, %v1649
      %v3078 = vcombine.low %v1653, %v1657
      %v3080 = vunpack.c.l.s4 1966171168
      %v3081 = vunpack.c.0.s8 %v3080
      %v3082 = vlaneseq
      %v3083 = vshrl.u32 %v3082, 7
      %v3084 = vsub.s32 %v3081, %v3083
      %v3085 = vrot.slane %v3075, %v3084
      %v3087 = vunpack.c.l.s4 1966171168
      %v3088 = vunpack.c.0.s8 %v3087
      %v3089 = vlaneseq
      %v3090 = vshrl.u32 %v3089, 7
      %v3091 = vsub.s32 %v3088, %v3090
      %v3092 = vrot.slane %v3076, %v3091
      %v3094 = vunpack.c.l.s4 1966171168
      %v3095 = vunpack.c.0.s8 %v3094
      %v3096 = vlaneseq
      %v3097 = vshrl.u32 %v3096, 7
      %v3098 = vsub.s32 %v3095, %v3097
      %v3099 = vrot.slane %v3077, %v3098
      %v3101 = vunpack.c.l.s4 1966171168
      %v3102 = vunpack.c.0.s8 %v3101
      %v3103 = vlaneseq
      %v3104 = vshrl.u32 %v3103, 7
      %v3105 = vsub.s32 %v3102, %v3104
      %v3106 = vrot.slane %v3078, %v3105
      %v3107 = vcombine.low %v3085, %v3092
      %v3108 = vcombine.low %v3099, %v3106
      %v3110 = vunpack.c.l.s4 1966171168
      %v3111 = vunpack.c.0.s8 %v3110
      %v3112 = vlaneseq
      %v3113 = vshrl.u32 %v3112, 7
      %v3114 = vsub.s32 %v3111, %v3113
      %v3115 = vrot.slane %v3107, %v3114
      %v3117 = vunpack.c.l.s4 1966171168
      %v3118 = vunpack.c.0.s8 %v3117
      %v3119 = vlaneseq
      %v3120 = vshrl.u32 %v3119, 7
      %v3121 = vsub.s32 %v3118, %v3120
      %v3122 = vrot.slane %v3108, %v3121
      %v3123 = vcombine.low %v3115, %v3122
      %v3124 = vcombine.low %v1661, %v1665
      %v3125 = vcombine.low %v1669, %v1673
      %v3126 = vcombine.low %v1677, %v1681
      %v3127 = vcombine.low %v1685, %v1689
      %v3129 = vunpack.c.l.s4 1966171168
      %v3130 = vunpack.c.0.s8 %v3129
      %v3131 = vlaneseq
      %v3132 = vshrl.u32 %v3131, 7
      %v3133 = vsub.s32 %v3130, %v3132
      %v3134 = vrot.slane %v3124, %v3133
      %v3136 = vunpack.c.l.s4 1966171168
      %v3137 = vunpack.c.0.s8 %v3136
      %v3138 = vlaneseq
      %v3139 = vshrl.u32 %v3138, 7
      %v3140 = vsub.s32 %v3137, %v3139
      %v3141 = vrot.slane %v3125, %v3140
      %v3143 = vunpack.c.l.s4 1966171168
      %v3144 = vunpack.c.0.s8 %v3143
      %v3145 = vlaneseq
      %v3146 = vshrl.u32 %v3145, 7
      %v3147 = vsub.s32 %v3144, %v3146
      %v3148 = vrot.slane %v3126, %v3147
      %v3150 = vunpack.c.l.s4 1966171168
      %v3151 = vunpack.c.0.s8 %v3150
      %v3152 = vlaneseq
      %v3153 = vshrl.u32 %v3152, 7
      %v3154 = vsub.s32 %v3151, %v3153
      %v3155 = vrot.slane %v3127, %v3154
      %v3156 = vcombine.low %v3134, %v3141
      %v3157 = vcombine.low %v3148, %v3155
      %v3159 = vunpack.c.l.s4 1966171168
      %v3160 = vunpack.c.0.s8 %v3159
      %v3161 = vlaneseq
      %v3162 = vshrl.u32 %v3161, 7
      %v3163 = vsub.s32 %v3160, %v3162
      %v3164 = vrot.slane %v3156, %v3163
      %v3166 = vunpack.c.l.s4 1966171168
      %v3167 = vunpack.c.0.s8 %v3166
      %v3168 = vlaneseq
      %v3169 = vshrl.u32 %v3168, 7
      %v3170 = vsub.s32 %v3167, %v3169
      %v3171 = vrot.slane %v3157, %v3170
      %v3172 = vcombine.low %v3164, %v3171
      %v3173 = vcombine.low %v1693, %v1697
      %v3174 = vcombine.low %v1701, %v1705
      %v3175 = vcombine.low %v1709, %v1713
      %v3176 = vcombine.low %v1717, %v1721
      %v3178 = vunpack.c.l.s4 1966171168
      %v3179 = vunpack.c.0.s8 %v3178
      %v3180 = vlaneseq
      %v3181 = vshrl.u32 %v3180, 7
      %v3182 = vsub.s32 %v3179, %v3181
      %v3183 = vrot.slane %v3173, %v3182
      %v3185 = vunpack.c.l.s4 1966171168
      %v3186 = vunpack.c.0.s8 %v3185
      %v3187 = vlaneseq
      %v3188 = vshrl.u32 %v3187, 7
      %v3189 = vsub.s32 %v3186, %v3188
      %v3190 = vrot.slane %v3174, %v3189
      %v3192 = vunpack.c.l.s4 1966171168
      %v3193 = vunpack.c.0.s8 %v3192
      %v3194 = vlaneseq
      %v3195 = vshrl.u32 %v3194, 7
      %v3196 = vsub.s32 %v3193, %v3195
      %v3197 = vrot.slane %v3175, %v3196
      %v3199 = vunpack.c.l.s4 1966171168
      %v3200 = vunpack.c.0.s8 %v3199
      %v3201 = vlaneseq
      %v3202 = vshrl.u32 %v3201, 7
      %v3203 = vsub.s32 %v3200, %v3202
      %v3204 = vrot.slane %v3176, %v3203
      %v3205 = vcombine.low %v3183, %v3190
      %v3206 = vcombine.low %v3197, %v3204
      %v3208 = vunpack.c.l.s4 1966171168
      %v3209 = vunpack.c.0.s8 %v3208
      %v3210 = vlaneseq
      %v3211 = vshrl.u32 %v3210, 7
      %v3212 = vsub.s32 %v3209, %v3211
      %v3213 = vrot.slane %v3205, %v3212
      %v3215 = vunpack.c.l.s4 1966171168
      %v3216 = vunpack.c.0.s8 %v3215
      %v3217 = vlaneseq
      %v3218 = vshrl.u32 %v3217, 7
      %v3219 = vsub.s32 %v3216, %v3218
      %v3220 = vrot.slane %v3206, %v3219
      %v3221 = vcombine.low %v3213, %v3220
      %v3222 = vcombine.low %v1725, %v1729
      %v3223 = vcombine.low %v1733, %v1737
      %v3224 = vcombine.low %v1741, %v1745
      %v3225 = vcombine.low %v1749, %v1753
      %v3227 = vunpack.c.l.s4 1966171168
      %v3228 = vunpack.c.0.s8 %v3227
      %v3229 = vlaneseq
      %v3230 = vshrl.u32 %v3229, 7
      %v3231 = vsub.s32 %v3228, %v3230
      %v3232 = vrot.slane %v3222, %v3231
      %v3234 = vunpack.c.l.s4 1966171168
      %v3235 = vunpack.c.0.s8 %v3234
      %v3236 = vlaneseq
      %v3237 = vshrl.u32 %v3236, 7
      %v3238 = vsub.s32 %v3235, %v3237
      %v3239 = vrot.slane %v3223, %v3238
      %v3241 = vunpack.c.l.s4 1966171168
      %v3242 = vunpack.c.0.s8 %v3241
      %v3243 = vlaneseq
      %v3244 = vshrl.u32 %v3243, 7
      %v3245 = vsub.s32 %v3242, %v3244
      %v3246 = vrot.slane %v3224, %v3245
      %v3248 = vunpack.c.l.s4 1966171168
      %v3249 = vunpack.c.0.s8 %v3248
      %v3250 = vlaneseq
      %v3251 = vshrl.u32 %v3250, 7
      %v3252 = vsub.s32 %v3249, %v3251
      %v3253 = vrot.slane %v3225, %v3252
      %v3254 = vcombine.low %v3232, %v3239
      %v3255 = vcombine.low %v3246, %v3253
      %v3257 = vunpack.c.l.s4 1966171168
      %v3258 = vunpack.c.0.s8 %v3257
      %v3259 = vlaneseq
      %v3260 = vshrl.u32 %v3259, 7
      %v3261 = vsub.s32 %v3258, %v3260
      %v3262 = vrot.slane %v3254, %v3261
      %v3264 = vunpack.c.l.s4 1966171168
      %v3265 = vunpack.c.0.s8 %v3264
      %v3266 = vlaneseq
      %v3267 = vshrl.u32 %v3266, 7
      %v3268 = vsub.s32 %v3265, %v3267
      %v3269 = vrot.slane %v3255, %v3268
      %v3270 = vcombine.low %v3262, %v3269
      %v3271 = vcombine.low %v1757, %v1761
      %v3272 = vcombine.low %v1765, %v1769
      %v3273 = vcombine.low %v1773, %v1777
      %v3274 = vcombine.low %v1781, %v1785
      %v3276 = vunpack.c.l.s4 1966171168
      %v3277 = vunpack.c.0.s8 %v3276
      %v3278 = vlaneseq
      %v3279 = vshrl.u32 %v3278, 7
      %v3280 = vsub.s32 %v3277, %v3279
      %v3281 = vrot.slane %v3271, %v3280
      %v3283 = vunpack.c.l.s4 1966171168
      %v3284 = vunpack.c.0.s8 %v3283
      %v3285 = vlaneseq
      %v3286 = vshrl.u32 %v3285, 7
      %v3287 = vsub.s32 %v3284, %v3286
      %v3288 = vrot.slane %v3272, %v3287
      %v3290 = vunpack.c.l.s4 1966171168
      %v3291 = vunpack.c.0.s8 %v3290
      %v3292 = vlaneseq
      %v3293 = vshrl.u32 %v3292, 7
      %v3294 = vsub.s32 %v3291, %v3293
      %v3295 = vrot.slane %v3273, %v3294
      %v3297 = vunpack.c.l.s4 1966171168
      %v3298 = vunpack.c.0.s8 %v3297
      %v3299 = vlaneseq
      %v3300 = vshrl.u32 %v3299, 7
      %v3301 = vsub.s32 %v3298, %v3300
      %v3302 = vrot.slane %v3274, %v3301
      %v3303 = vcombine.low %v3281, %v3288
      %v3304 = vcombine.low %v3295, %v3302
      %v3306 = vunpack.c.l.s4 1966171168
      %v3307 = vunpack.c.0.s8 %v3306
      %v3308 = vlaneseq
      %v3309 = vshrl.u32 %v3308, 7
      %v3310 = vsub.s32 %v3307, %v3309
      %v3311 = vrot.slane %v3303, %v3310
      %v3313 = vunpack.c.l.s4 1966171168
      %v3314 = vunpack.c.0.s8 %v3313
      %v3315 = vlaneseq
      %v3316 = vshrl.u32 %v3315, 7
      %v3317 = vsub.s32 %v3314, %v3316
      %v3318 = vrot.slane %v3304, %v3317
      %v3319 = vcombine.low %v3311, %v3318
      %v3320 = vcombine.low %v1789, %v1793
      %v3321 = vcombine.low %v1797, %v1801
      %v3322 = vcombine.low %v1805, %v1809
      %v3323 = vcombine.low %v1813, %v1817
      %v3325 = vunpack.c.l.s4 1966171168
      %v3326 = vunpack.c.0.s8 %v3325
      %v3327 = vlaneseq
      %v3328 = vshrl.u32 %v3327, 7
      %v3329 = vsub.s32 %v3326, %v3328
      %v3330 = vrot.slane %v3320, %v3329
      %v3332 = vunpack.c.l.s4 1966171168
      %v3333 = vunpack.c.0.s8 %v3332
      %v3334 = vlaneseq
      %v3335 = vshrl.u32 %v3334, 7
      %v3336 = vsub.s32 %v3333, %v3335
      %v3337 = vrot.slane %v3321, %v3336
      %v3339 = vunpack.c.l.s4 1966171168
      %v3340 = vunpack.c.0.s8 %v3339
      %v3341 = vlaneseq
      %v3342 = vshrl.u32 %v3341, 7
      %v3343 = vsub.s32 %v3340, %v3342
      %v3344 = vrot.slane %v3322, %v3343
      %v3346 = vunpack.c.l.s4 1966171168
      %v3347 = vunpack.c.0.s8 %v3346
      %v3348 = vlaneseq
      %v3349 = vshrl.u32 %v3348, 7
      %v3350 = vsub.s32 %v3347, %v3349
      %v3351 = vrot.slane %v3323, %v3350
      %v3352 = vcombine.low %v3330, %v3337
      %v3353 = vcombine.low %v3344, %v3351
      %v3355 = vunpack.c.l.s4 1966171168
      %v3356 = vunpack.c.0.s8 %v3355
      %v3357 = vlaneseq
      %v3358 = vshrl.u32 %v3357, 7
      %v3359 = vsub.s32 %v3356, %v3358
      %v3360 = vrot.slane %v3352, %v3359
      %v3362 = vunpack.c.l.s4 1966171168
      %v3363 = vunpack.c.0.s8 %v3362
      %v3364 = vlaneseq
      %v3365 = vshrl.u32 %v3364, 7
      %v3366 = vsub.s32 %v3363, %v3365
      %v3367 = vrot.slane %v3353, %v3366
      %v3368 = vcombine.low %v3360, %v3367
      %v3369 = vcombine.low %v1821, %v1825
      %v3370 = vcombine.low %v1829, %v1833
      %v3371 = vcombine.low %v1837, %v1841
      %v3372 = vcombine.low %v1845, %v1849
      %v3374 = vunpack.c.l.s4 1966171168
      %v3375 = vunpack.c.0.s8 %v3374
      %v3376 = vlaneseq
      %v3377 = vshrl.u32 %v3376, 7
      %v3378 = vsub.s32 %v3375, %v3377
      %v3379 = vrot.slane %v3369, %v3378
      %v3381 = vunpack.c.l.s4 1966171168
      %v3382 = vunpack.c.0.s8 %v3381
      %v3383 = vlaneseq
      %v3384 = vshrl.u32 %v3383, 7
      %v3385 = vsub.s32 %v3382, %v3384
      %v3386 = vrot.slane %v3370, %v3385
      %v3388 = vunpack.c.l.s4 1966171168
      %v3389 = vunpack.c.0.s8 %v3388
      %v3390 = vlaneseq
      %v3391 = vshrl.u32 %v3390, 7
      %v3392 = vsub.s32 %v3389, %v3391
      %v3393 = vrot.slane %v3371, %v3392
      %v3395 = vunpack.c.l.s4 1966171168
      %v3396 = vunpack.c.0.s8 %v3395
      %v3397 = vlaneseq
      %v3398 = vshrl.u32 %v3397, 7
      %v3399 = vsub.s32 %v3396, %v3398
      %v3400 = vrot.slane %v3372, %v3399
      %v3401 = vcombine.low %v3379, %v3386
      %v3402 = vcombine.low %v3393, %v3400
      %v3404 = vunpack.c.l.s4 1966171168
      %v3405 = vunpack.c.0.s8 %v3404
      %v3406 = vlaneseq
      %v3407 = vshrl.u32 %v3406, 7
      %v3408 = vsub.s32 %v3405, %v3407
      %v3409 = vrot.slane %v3401, %v3408
      %v3411 = vunpack.c.l.s4 1966171168
      %v3412 = vunpack.c.0.s8 %v3411
      %v3413 = vlaneseq
      %v3414 = vshrl.u32 %v3413, 7
      %v3415 = vsub.s32 %v3412, %v3414
      %v3416 = vrot.slane %v3402, %v3415
      %v3417 = vcombine.low %v3409, %v3416
      %3418 = vset.pattern.permute.xlu0 0
      %3419 = vperm.xlu0 %3418, %v1898
      %v3420 = vpop.permute.xlu0 %3419
      %3421 = vset.pattern.permute.xlu0 0
      %3422 = vperm.xlu0 %3421, %v1947
      %v3423 = vpop.permute.xlu0 %3422
      %3424 = vset.pattern.permute.xlu0 0
      %3425 = vperm.xlu0 %3424, %v1996
      %v3426 = vpop.permute.xlu0 %3425
      %3427 = vset.pattern.permute.xlu0 0
      %3428 = vperm.xlu0 %3427, %v2045
      %v3429 = vpop.permute.xlu0 %3428
      %3430 = vset.pattern.permute.xlu0 0
      %3431 = vperm.xlu0 %3430, %v2094
      %v3432 = vpop.permute.xlu0 %3431
      %3433 = vset.pattern.permute.xlu0 0
      %3434 = vperm.xlu0 %3433, %v2143
      %v3435 = vpop.permute.xlu0 %3434
      %3436 = vset.pattern.permute.xlu0 0
      %3437 = vperm.xlu0 %3436, %v2192
      %v3438 = vpop.permute.xlu0 %3437
      %3439 = vset.pattern.permute.xlu0 0
      %3440 = vperm.xlu0 %3439, %v2241
      %v3441 = vpop.permute.xlu0 %3440
      %3442 = vset.pattern.permute.xlu0 0
      %3443 = vperm.xlu0 %3442, %v2290
      %v3444 = vpop.permute.xlu0 %3443
      %3445 = vset.pattern.permute.xlu0 0
      %3446 = vperm.xlu0 %3445, %v2339
      %v3447 = vpop.permute.xlu0 %3446
      %3448 = vset.pattern.permute.xlu0 0
      %3449 = vperm.xlu0 %3448, %v2388
      %v3450 = vpop.permute.xlu0 %3449
      %3451 = vset.pattern.permute.xlu0 0
      %3452 = vperm.xlu0 %3451, %v2437
      %v3453 = vpop.permute.xlu0 %3452
      %3454 = vset.pattern.permute.xlu0 0
      %3455 = vperm.xlu0 %3454, %v2486
      %v3456 = vpop.permute.xlu0 %3455
      %3457 = vset.pattern.permute.xlu0 0
      %3458 = vperm.xlu0 %3457, %v2535
      %v3459 = vpop.permute.xlu0 %3458
      %3460 = vset.pattern.permute.xlu0 0
      %3461 = vperm.xlu0 %3460, %v2584
      %v3462 = vpop.permute.xlu0 %3461
      %3463 = vset.pattern.permute.xlu0 0
      %3464 = vperm.xlu0 %3463, %v2633
      %v3465 = vpop.permute.xlu0 %3464
      %3466 = vset.pattern.permute.xlu0 0
      %3467 = vperm.xlu0 %3466, %v2682
      %v3468 = vpop.permute.xlu0 %3467
      %3469 = vset.pattern.permute.xlu0 0
      %3470 = vperm.xlu0 %3469, %v2731
      %v3471 = vpop.permute.xlu0 %3470
      %3472 = vset.pattern.permute.xlu0 0
      %3473 = vperm.xlu0 %3472, %v2780
      %v3474 = vpop.permute.xlu0 %3473
      %3475 = vset.pattern.permute.xlu0 0
      %3476 = vperm.xlu0 %3475, %v2829
      %v3477 = vpop.permute.xlu0 %3476
      %3478 = vset.pattern.permute.xlu0 0
      %3479 = vperm.xlu0 %3478, %v2878
      %v3480 = vpop.permute.xlu0 %3479
      %3481 = vset.pattern.permute.xlu0 0
      %3482 = vperm.xlu0 %3481, %v2927
      %v3483 = vpop.permute.xlu0 %3482
      %3484 = vset.pattern.permute.xlu0 0
      %3485 = vperm.xlu0 %3484, %v2976
      %v3486 = vpop.permute.xlu0 %3485
      %3487 = vset.pattern.permute.xlu0 0
      %3488 = vperm.xlu0 %3487, %v3025
      %v3489 = vpop.permute.xlu0 %3488
      %3490 = vset.pattern.permute.xlu0 0
      %3491 = vperm.xlu0 %3490, %v3074
      %v3492 = vpop.permute.xlu0 %3491
      %3493 = vset.pattern.permute.xlu0 0
      %3494 = vperm.xlu0 %3493, %v3123
      %v3495 = vpop.permute.xlu0 %3494
      %3496 = vset.pattern.permute.xlu0 0
      %3497 = vperm.xlu0 %3496, %v3172
      %v3498 = vpop.permute.xlu0 %3497
      %3499 = vset.pattern.permute.xlu0 0
      %3500 = vperm.xlu0 %3499, %v3221
      %v3501 = vpop.permute.xlu0 %3500
      %3502 = vset.pattern.permute.xlu0 0
      %3503 = vperm.xlu0 %3502, %v3270
      %v3504 = vpop.permute.xlu0 %3503
      %3505 = vset.pattern.permute.xlu0 0
      %3506 = vperm.xlu0 %3505, %v3319
      %v3507 = vpop.permute.xlu0 %3506
      %3508 = vset.pattern.permute.xlu0 0
      %3509 = vperm.xlu0 %3508, %v3368
      %v3510 = vpop.permute.xlu0 %3509
      %3511 = vset.pattern.permute.xlu0 0
      %3512 = vperm.xlu0 %3511, %v3417
      %v3513 = vpop.permute.xlu0 %3512
      %v3514 = vlaneseq
      %v3515 = vand.u32 %v3514, 127
      %v3516 = vlaneseq
      %v3517 = vshrl.u32 %v3516, 7
      %v3518 = vsub.s32 %v3515, %v3517
      %v3519 = vrot.slane %v3420, %v3518
      %v3520 = vadd.s32 %v3515, 4294967288
      %v3521 = vlaneseq
      %v3522 = vshrl.u32 %v3521, 7
      %v3523 = vsub.s32 %v3520, %v3522
      %v3524 = vrot.slane %v3423, %v3523
      %vm3525 = vcmask 130112
      %v3526 = vsel %vm3525, %v3524, %v3519
      %v3527 = vadd.s32 %v3515, 4294967280
      %v3528 = vlaneseq
      %v3529 = vshrl.u32 %v3528, 7
      %v3530 = vsub.s32 %v3527, %v3529
      %v3531 = vrot.slane %v3426, %v3530
      %vm3532 = vcmask 195712
      %v3533 = vsel %vm3532, %v3531, %v3526
      %v3534 = vadd.s32 %v3515, 4294967272
      %v3535 = vlaneseq
      %v3536 = vshrl.u32 %v3535, 7
      %v3537 = vsub.s32 %v3534, %v3536
      %v3538 = vrot.slane %v3429, %v3537
      %vm3539 = vcmask 261312
      %v3540 = vsel %vm3539, %v3538, %v3533
      %v3541 = vadd.s32 %v3515, 4294967264
      %v3542 = vlaneseq
      %v3543 = vshrl.u32 %v3542, 7
      %v3544 = vsub.s32 %v3541, %v3543
      %v3545 = vrot.slane %v3432, %v3544
      %vm3546 = vcmask 326912
      %v3547 = vsel %vm3546, %v3545, %v3540
      %v3548 = vadd.s32 %v3515, 4294967256
      %v3549 = vlaneseq
      %v3550 = vshrl.u32 %v3549, 7
      %v3551 = vsub.s32 %v3548, %v3550
      %v3552 = vrot.slane %v3435, %v3551
      %vm3553 = vcmask 392512
      %v3554 = vsel %vm3553, %v3552, %v3547
      %v3555 = vadd.s32 %v3515, 4294967248
      %v3556 = vlaneseq
      %v3557 = vshrl.u32 %v3556, 7
      %v3558 = vsub.s32 %v3555, %v3557
      %v3559 = vrot.slane %v3438, %v3558
      %vm3560 = vcmask 458112
      %v3561 = vsel %vm3560, %v3559, %v3554
      %v3562 = vadd.s32 %v3515, 4294967240
      %v3563 = vlaneseq
      %v3564 = vshrl.u32 %v3563, 7
      %v3565 = vsub.s32 %v3562, %v3564
      %v3566 = vrot.slane %v3441, %v3565
      %vm3567 = vcmask 523712
      %v3568 = vsel %vm3567, %v3566, %v3561
      %v3569 = vadd.s32 %v3515, 4294967232
      %v3570 = vlaneseq
      %v3571 = vshrl.u32 %v3570, 7
      %v3572 = vsub.s32 %v3569, %v3571
      %v3573 = vrot.slane %v3444, %v3572
      %vm3574 = vcmask 589312
      %v3575 = vsel %vm3574, %v3573, %v3568
      %v3576 = vadd.s32 %v3515, 4294967224
      %v3577 = vlaneseq
      %v3578 = vshrl.u32 %v3577, 7
      %v3579 = vsub.s32 %v3576, %v3578
      %v3580 = vrot.slane %v3447, %v3579
      %vm3581 = vcmask 654912
      %v3582 = vsel %vm3581, %v3580, %v3575
      %v3583 = vadd.s32 %v3515, 4294967216
      %v3584 = vlaneseq
      %v3585 = vshrl.u32 %v3584, 7
      %v3586 = vsub.s32 %v3583, %v3585
      %v3587 = vrot.slane %v3450, %v3586
      %vm3588 = vcmask 720512
      %v3589 = vsel %vm3588, %v3587, %v3582
      %v3590 = vadd.s32 %v3515, 4294967208
      %v3591 = vlaneseq
      %v3592 = vshrl.u32 %v3591, 7
      %v3593 = vsub.s32 %v3590, %v3592
      %v3594 = vrot.slane %v3453, %v3593
      %vm3595 = vcmask 786112
      %v3596 = vsel %vm3595, %v3594, %v3589
      %v3597 = vadd.s32 %v3515, 4294967200
      %v3598 = vlaneseq
      %v3599 = vshrl.u32 %v3598, 7
      %v3600 = vsub.s32 %v3597, %v3599
      %v3601 = vrot.slane %v3456, %v3600
      %vm3602 = vcmask 851712
      %v3603 = vsel %vm3602, %v3601, %v3596
      %v3604 = vadd.s32 %v3515, 4294967192
      %v3605 = vlaneseq
      %v3606 = vshrl.u32 %v3605, 7
      %v3607 = vsub.s32 %v3604, %v3606
      %v3608 = vrot.slane %v3459, %v3607
      %vm3609 = vcmask 917312
      %v3610 = vsel %vm3609, %v3608, %v3603
      %v3611 = vadd.s32 %v3515, 4294967184
      %v3612 = vlaneseq
      %v3613 = vshrl.u32 %v3612, 7
      %v3614 = vsub.s32 %v3611, %v3613
      %v3615 = vrot.slane %v3462, %v3614
      %vm3616 = vcmask 982912
      %v3617 = vsel %vm3616, %v3615, %v3610
      %v3618 = vadd.s32 %v3515, 4294967176
      %v3619 = vlaneseq
      %v3620 = vshrl.u32 %v3619, 7
      %v3621 = vsub.s32 %v3618, %v3620
      %v3622 = vrot.slane %v3465, %v3621
      %vm3623 = vcmask 1048512
      %v3624 = vsel %vm3623, %v3622, %v3617
      %v3625 = vlaneseq
      %v3626 = vshrl.u32 %v3625, 7
      %v3627 = vsub.s32 %v3515, %v3626
      %v3628 = vrot.slane %v3468, %v3627
      %v3629 = vlaneseq
      %v3630 = vshrl.u32 %v3629, 7
      %v3631 = vsub.s32 %v3520, %v3630
      %v3632 = vrot.slane %v3471, %v3631
      %v3633 = vsel %vm3525, %v3632, %v3628
      %v3634 = vlaneseq
      %v3635 = vshrl.u32 %v3634, 7
      %v3636 = vsub.s32 %v3527, %v3635
      %v3637 = vrot.slane %v3474, %v3636
      %v3638 = vsel %vm3532, %v3637, %v3633
      %v3639 = vlaneseq
      %v3640 = vshrl.u32 %v3639, 7
      %v3641 = vsub.s32 %v3534, %v3640
      %v3642 = vrot.slane %v3477, %v3641
      %v3643 = vsel %vm3539, %v3642, %v3638
      %v3644 = vlaneseq
      %v3645 = vshrl.u32 %v3644, 7
      %v3646 = vsub.s32 %v3541, %v3645
      %v3647 = vrot.slane %v3480, %v3646
      %v3648 = vsel %vm3546, %v3647, %v3643
      %v3649 = vlaneseq
      %v3650 = vshrl.u32 %v3649, 7
      %v3651 = vsub.s32 %v3548, %v3650
      %v3652 = vrot.slane %v3483, %v3651
      %v3653 = vsel %vm3553, %v3652, %v3648
      %v3654 = vlaneseq
      %v3655 = vshrl.u32 %v3654, 7
      %v3656 = vsub.s32 %v3555, %v3655
      %v3657 = vrot.slane %v3486, %v3656
      %v3658 = vsel %vm3560, %v3657, %v3653
      %v3659 = vlaneseq
      %v3660 = vshrl.u32 %v3659, 7
      %v3661 = vsub.s32 %v3562, %v3660
      %v3662 = vrot.slane %v3489, %v3661
      %v3663 = vsel %vm3567, %v3662, %v3658
      %v3664 = vlaneseq
      %v3665 = vshrl.u32 %v3664, 7
      %v3666 = vsub.s32 %v3569, %v3665
      %v3667 = vrot.slane %v3492, %v3666
      %v3668 = vsel %vm3574, %v3667, %v3663
      %v3669 = vlaneseq
      %v3670 = vshrl.u32 %v3669, 7
      %v3671 = vsub.s32 %v3576, %v3670
      %v3672 = vrot.slane %v3495, %v3671
      %v3673 = vsel %vm3581, %v3672, %v3668
      %v3674 = vlaneseq
      %v3675 = vshrl.u32 %v3674, 7
      %v3676 = vsub.s32 %v3583, %v3675
      %v3677 = vrot.slane %v3498, %v3676
      %v3678 = vsel %vm3588, %v3677, %v3673
      %v3679 = vlaneseq
      %v3680 = vshrl.u32 %v3679, 7
      %v3681 = vsub.s32 %v3590, %v3680
      %v3682 = vrot.slane %v3501, %v3681
      %v3683 = vsel %vm3595, %v3682, %v3678
      %v3684 = vlaneseq
      %v3685 = vshrl.u32 %v3684, 7
      %v3686 = vsub.s32 %v3597, %v3685
      %v3687 = vrot.slane %v3504, %v3686
      %v3688 = vsel %vm3602, %v3687, %v3683
      %v3689 = vlaneseq
      %v3690 = vshrl.u32 %v3689, 7
      %v3691 = vsub.s32 %v3604, %v3690
      %v3692 = vrot.slane %v3507, %v3691
      %v3693 = vsel %vm3609, %v3692, %v3688
      %v3694 = vlaneseq
      %v3695 = vshrl.u32 %v3694, 7
      %v3696 = vsub.s32 %v3611, %v3695
      %v3697 = vrot.slane %v3510, %v3696
      %v3698 = vsel %vm3616, %v3697, %v3693
      %v3699 = vlaneseq
      %v3700 = vshrl.u32 %v3699, 7
      %v3701 = vsub.s32 %v3618, %v3700
      %v3702 = vrot.slane %v3513, %v3701
      %v3703 = vsel %vm3623, %v3702, %v3698
      %v3704 = vcombine.low %v3624, %v3703
      %v3706 = vunpack.c.l.s4 1966171168
      %v3707 = vunpack.c.0.s8 %v3706
      %v3708 = vlaneseq
      %v3709 = vshrl.u32 %v3708, 7
      %v3710 = vsub.s32 %v3707, %v3709
      %v3711 = vrot.slane %v3704, %v3710
      %v3713 = vunpack.c.l.s4 1966171168
      %v3714 = vunpack.c.0.s8 %v3713
      %v3715 = vlaneseq
      %v3716 = vshrl.u32 %v3715, 7
      %v3717 = vsub.s32 %v3714, %v3716
      %v3718 = vrot.slane %v3711, %v3717
      %v3720 = vlaneseq
      %vm3721 = vcmp.ge.s32.totalorder %v3720, 0
      %vm3722 = vcmp.lt.s32.totalorder %v3720, 256
      %vm3723 = vmand %vm3721, %vm3722
      %3724 = vst.msk [vmem:[%s245] sm:$0x3] %vm3723, %v3718
      %s3725 = smul.u32 2, %s17
      %p3726 = scmp.lt.s32.totalorder %s3725, 3
      %s3727 = scalar_select %p3726, %s3725, 3
      %s3728 = scalar_lea.vmem %s5, %s3727
      // Predicated region
      $region41: #{listnet_forward.1} parent=39 // pred_check
        %p3729 = pneg %p145
      $region42: #{listnet_forward.1} parent=39 // pred_check_branch
        %3731 = sbr.rel (%p3729) target = $region44
      $region43: #{listnet_forward.1} parent=39 // pred_region
        %s3732 = smul.u32 2, %s17
      $region44: #{listnet_forward.1} parent=39 // pred_fallthru
        _
    $region40: #{listnet_forward.1} parent=5 // pred_fallthru
      _
    %p3733 = scmp.le.s32.totalorder 2, %s12
    // Predicated region
    $region45: #{listnet_forward.1} parent=5 // pred_check
      %p3734 = pneg %p3733
    $region46: #{listnet_forward.1} parent=5 // pred_check_branch
      %3736 = sbr.rel (%p3734) target = $region48
    $region47: #{listnet_forward.1} parent=5 // pred_region
      %s3737 = ssub.s32 %s12, 2
      // Predicated region
      $region49: #{listnet_forward.1} parent=47 // pred_check
        %p3738 = pneg %p151
      $region50: #{listnet_forward.1} parent=47 // pred_check_branch
        %3740 = sbr.rel (%p3738) target = $region52
      $region51: #{listnet_forward.1} parent=47 // pred_region
        %s3741 = smul.u32 2, %s18
        %p3742 = scmp.lt.s32.totalorder %s3741, 3
        %s3743 = scalar_select %p3742, %s3741, 3
        %s3744 = scalar_lea.vmem %s5, %s3743
      $region52: #{listnet_forward.1} parent=47 // pred_fallthru
        _
    $region48: #{listnet_forward.1} parent=5 // pred_fallthru
      _
  $region6: #{listnet_forward.1} parent=0 // loop_footer
    %s16 = sadd.s32 1, %s12
  $region7: #{listnet_forward.1} parent=0 // loop_footer_branch
    %11 = sbr.rel target = $region3
  $region8: #{listnet_forward.1} parent=0 // loop_exit
    _

</llo_original>
